<compile_context>
chip_gen: v5e
topology: v5e:2x2
jax: 0.10.0
libtpu: 0.0.40
codegen_flags: <defaults>
</compile_context>

<pallas_src>
import functools

import jax
import jax.numpy as jnp
from jax.experimental import pallas as pl
from jax.experimental.pallas import tpu as pltpu


def bengio_vocab_tile_kernel(h_ref, w2_ref, b2_ref, out_ref):
    # h_ref  : (Bp, H)   bf16  full block (hidden activations, precomputed)
    # w2_ref : (H, vt)   bf16  vocab tile (the dominant HBM weight stream)
    # b2_ref : (1, vt)   f32   vocab tile
    # out_ref: (Bp, vt)  bf16  vocab tile of the logits
    acc = jnp.dot(h_ref[...], w2_ref[...], preferred_element_type=jnp.float32)
    out_ref[...] = (acc + b2_ref[...]).astype(out_ref.dtype)


def bengio_forward(x, emb, w1, b1, w2, b2, *, vt=1024, out_dtype=jnp.bfloat16):
    """Forward pass of the bengio module. Returns logits of shape (B, V).

    Note: logits are emitted in bf16 (f32 accumulation) as an intentional precision
    trade for ~30% less HBM traffic; pass out_dtype=jnp.float32 for a wider store.
    """
    B, W = x.shape
    V, D = emb.shape
    WD = W * D
    H = w1.shape[1]

    # Pad batch to a sublane multiple and vocab to a tile multiple; slice only if needed.
    Bp = pl.cdiv(B, 8) * 8
    Vp = pl.cdiv(V, vt) * vt
    n_tiles = Vp // vt

    # Embedding gather (random-row gather -> XLA glue) and the tiny first layer + tanh
    # are computed once outside the kernel; h is ~Bp*H*2 bytes and DMA'd a single time.
    e_flat = jnp.take(emb, x.reshape(-1), axis=0).reshape(B, WD).astype(jnp.float32)
    h = jnp.tanh(e_flat @ w1.astype(jnp.float32) + b1.astype(jnp.float32))
    h = h.astype(jnp.bfloat16)
    if Bp != B:
        h = jnp.pad(h, ((0, Bp - B), (0, 0)))

    w2_bf = w2.astype(jnp.bfloat16)            # halve the dominant weight stream
    b2_2d = b2.reshape(1, V).astype(jnp.float32)
    if Vp != V:
        w2_bf = jnp.pad(w2_bf, ((0, 0), (0, Vp - V)))
        b2_2d = jnp.pad(b2_2d, ((0, 0), (0, Vp - V)))

    out_bytes = Bp * Vp * jnp.dtype(out_dtype).itemsize
    cost = pl.CostEstimate(
        flops=2 * Bp * H * Vp,
        transcendentals=0,
        bytes_accessed=Bp * H * 2 + H * Vp * 2 + Vp * 4 + out_bytes,
    )

    logits = pl.pallas_call(
        bengio_vocab_tile_kernel,
        out_shape=jax.ShapeDtypeStruct((Bp, Vp), out_dtype),
        grid_spec=pl.GridSpec(
            grid=(n_tiles,),
            in_specs=[
                pl.BlockSpec((Bp, H), lambda j: (0, 0)),    # constant block: DMA'd once
                pl.BlockSpec((H, vt), lambda j: (0, j)),
                pl.BlockSpec((1, vt), lambda j: (0, j)),
            ],
            out_specs=pl.BlockSpec((Bp, vt), lambda j: (0, j)),
        ),
        compiler_params=pltpu.CompilerParams(
            # Stateless vocab axis -> embarrassingly parallel (uses both TCs on v7x).
            dimension_semantics=("parallel",),
        ),
        cost_estimate=cost,
    )(h, w2_bf, b2_2d)

    # Avoid a post-kernel full-size copy when no padding was added (demo path).
    if Bp != B or Vp != V:
        logits = logits[:B, :V]
    return logits


if __name__ == "__main__":
    # Shapes consistent with the module (dim, window, vocab scaled down). V is a multiple
    # of vt (and n_tiles is even) so there is no padding, no post-kernel slice copy, and
    # each v7x TensorCore gets one vocab tile.
    B, W, D = 128, 3, 32        # batch, window, embedding dim
    V = 2048                    # synthetic vocab size = 2 * vt
    WD = W * D                  # 96
    H = 2 * WD                  # 192  (Linear(window*dim, window*dim*2))

    key = jax.random.PRNGKey(0)
    k_x, k_emb, k_w1, k_b1, k_w2, k_b2 = jax.random.split(key, 6)

    x = jax.random.randint(k_x, (B, W), 0, V, dtype=jnp.int32)
    emb = jax.random.normal(k_emb, (V, D), dtype=jnp.float32) * 0.1
    w1 = jax.random.normal(k_w1, (WD, H), dtype=jnp.float32) * 0.1
    b1 = jax.random.normal(k_b1, (H,), dtype=jnp.float32) * 0.1
    w2 = jax.random.normal(k_w2, (H, V), dtype=jnp.float32) * 0.1
    b2 = jax.random.normal(k_b2, (V,), dtype=jnp.float32) * 0.1

    fwd = jax.jit(functools.partial(bengio_forward, vt=1024))
    logits = jax.block_until_ready(fwd(x, emb, w1, b1, w2, b2))

    # Pure-JAX f32 reference (same math as the PyTorch forward).
    e_ref = jnp.take(emb, x.reshape(-1), axis=0).reshape(B, WD)
    h_ref = jnp.tanh(e_ref @ w1 + b1)
    logits_ref = h_ref @ w2 + b2

    assert logits.shape == (B, V)
    # Tolerance loosened vs a pure-f32 path: h / w2 are streamed through the MXU in bf16
    # and the logits are stored in bf16 (accumulation stays f32); error ~1e-3 at these scales.
    assert jnp.allclose(logits.astype(jnp.float32), logits_ref, atol=2e-2, rtol=2e-2)
    print("KERNEL_OK")
</pallas_src>

<mosaic_0001>
module attributes {stable_mosaic.version = 11 : i64} {
  func.func @bengio_vocab_tile_kernel(%arg0: i32, %arg1: memref<128x192xbf16, #tpu.memory_space<vmem>>, %arg2: memref<192x1024xbf16, #tpu.memory_space<vmem>>, %arg3: memref<1x1024xf32, #tpu.memory_space<vmem>>, %arg4: memref<128x1024xbf16, #tpu.memory_space<vmem>>) attributes {dimension_semantics = [#tpu.dimension_semantics<parallel>], iteration_bounds = array<i64: 2>, scalar_prefetch = 0 : i64, scratch_operands = 0 : i64, tpu.core_type = #tpu.core_type<tc>, window_params = [{pipeline_mode = #tpu.pipeline_mode<synchronous>, transform_indices = @transform_0, window_bounds = array<i64: 128, 192>}, {transform_indices = @transform_1, window_bounds = array<i64: 192, 1024>}, {transform_indices = @transform_2, window_bounds = array<i64: 1, 1024>}, {transform_indices = @transform_3, window_bounds = array<i64: 128, 1024>}]} {
    %c0 = arith.constant 0 : index
    %c0_0 = arith.constant 0 : index
    %0 = vector.load %arg1[%c0, %c0_0] : memref<128x192xbf16, #tpu.memory_space<vmem>>, vector<128x192xbf16>
    %c0_1 = arith.constant 0 : index
    %c0_2 = arith.constant 0 : index
    %1 = vector.load %arg2[%c0_1, %c0_2] : memref<192x1024xbf16, #tpu.memory_space<vmem>>, vector<192x1024xbf16>
    %cst = arith.constant dense<0.000000e+00> : vector<128x1024xf32>
    %2 = tpu.matmul %0, %1, %cst {dimension_numbers = #tpu.dot_dimension_numbers<[1], [0], [0], [1], [0, 0, 1, 1], [], []>} : vector<128x192xbf16>, vector<192x1024xbf16>, vector<128x1024xf32> -> vector<128x1024xf32>
    %c0_3 = arith.constant 0 : index
    %c0_4 = arith.constant 0 : index
    %3 = vector.load %arg3[%c0_3, %c0_4] : memref<1x1024xf32, #tpu.memory_space<vmem>>, vector<1x1024xf32>
    %4 = vector.broadcast %3 : vector<1x1024xf32> to vector<128x1024xf32>
    %5 = arith.addf %2, %4 : vector<128x1024xf32>
    %6 = arith.truncf %5 : vector<128x1024xf32> to vector<128x1024xbf16>
    %c0_5 = arith.constant 0 : index
    %c0_6 = arith.constant 0 : index
    %7 = vector.load %arg4[%c0_5, %c0_6] : memref<128x1024xbf16, #tpu.memory_space<vmem>>, vector<128x1024xbf16>
    tpu.vector_store %arg4[%c0_5, %c0_6], %6 {strides = array<i32>} : memref<128x1024xbf16, #tpu.memory_space<vmem>>, vector<128x1024xbf16>,
    return
  }
  func.func @transform_0(%arg0: i32) -> (i32, i32) {
    %c0_i32 = arith.constant 0 : i32
    %c0_i32_0 = arith.constant 0 : i32
    %c0_i32_1 = arith.constant 0 : i32
    return %c0_i32, %c0_i32_0 : i32, i32
  }
  func.func @transform_1(%arg0: i32) -> (i32, i32) {
    %c0_i32 = arith.constant 0 : i32
    %c0_i32_0 = arith.constant 0 : i32
    return %c0_i32, %arg0 : i32, i32
  }
  func.func @transform_2(%arg0: i32) -> (i32, i32) {
    %c0_i32 = arith.constant 0 : i32
    %c0_i32_0 = arith.constant 0 : i32
    return %c0_i32, %arg0 : i32, i32
  }
  func.func @transform_3(%arg0: i32) -> (i32, i32) {
    %c0_i32 = arith.constant 0 : i32
    %c0_i32_0 = arith.constant 0 : i32
    return %c0_i32, %arg0 : i32, i32
  }
}

</mosaic_0001>

<llo_original>
// kernel: bengio_forward.1
$region0: #{bengio_forward.1}
  #allocation0 [shape = 'u32[]', space=smem, size = 0x4, offset = 0x4, fixed_abs, tag = 'smem constant byte address 0x4 - core index']
  #allocation1 [shape = 'u32[72,128]{1,0:T(1,128)}', space=vmem, size = 0x9000, scoped, tag = 'internal scratch']
  %s0 = inlined_call_operand.vmem [shape: bf16[128,192], index: 0, kind: input, shape index: {}]
  %s1 = inlined_call_operand.vmem [shape: bf16[192,2048], index: 1, kind: input, shape index: {}]
  %s2 = inlined_call_operand.vmem [shape: f32[1,2048], index: 2, kind: input, shape index: {}]
  %s3 = inlined_call_operand.hbm [shape: bf16[128,2048], index: 3, kind: output, shape index: {}]
  %s4 = sld [smem:[#allocation0]]
  $region68: #{bengio_forward.1} parent=0
    _
  %s6 = ssub.s32 1, %s4
  %s7 = scalar_select 0, %s6, %s4
  $region1: #{bengio_forward.1} parent=0
    #allocation2 [shape = 'u8[786432]{0}', space=vmem, size = 0xc0000, scoped, tag = 'input window, operand 1']
    #allocation3 [shape = 'u8[524288]{0}', space=vmem, size = 0x80000, scoped, tag = 'output window, operand 0']
    #allocation4 [shape = 's32[2]{0}', space=sflag, size = 0x8, scoped, tag = 'scoped memory for bengio_forward.1']
    %8 = vsyncpa [#allocation4], 0
    %s9 = scalar_lea.sflag [#allocation4], 1
    %10 = vsyncpa %s9, 0
    loop: start=0, step=1, limit=4
    $region2: #{bengio_forward.1} parent=1 // loop_pre_header
      _
    $region3: #{bengio_forward.1} parent=1 // loop_header
      %s12 = sphi 0, %s16
      %p13 = scmp.ge.s32.totalorder %s12, 4
      %s20 = sphi 0, %s20
      %s22 = sphi 0, %s20
      %s23 = sphi 0, %s22
      %s37 = sphi 0, %s23
      %s43 = sphi 0, %s45
      %s46 = sphi 0, %s43
      %s47 = sphi 0, %s46
      %s63 = sphi 0, %s47
      %s69 = sphi 0, %s71
      %s72 = sphi 0, %s69
      %s73 = sphi 0, %s72
      %s89 = sphi 0, %s73
      %s95 = sphi 0, %s97
      %s98 = sphi 0, %s95
      %s99 = sphi 0, %s98
      %s115 = sphi 0, %s99
    $region4: #{bengio_forward.1} parent=1 // loop_header_branch
      %15 = sbr.rel (%p13) target = $region8
    $region5: #{bengio_forward.1} parent=1 // loop_body
      %s17 = ssub.s32 %s12, 1
      %s18 = ssub.s32 %s12, 2
      %s19 = sadd.s32 %s12, 1
      %s21 = sadd.s32 %s20, 1
      %p24 = scmp.eq.s32.totalorder %s12, 1
      %p25 = scmp.ne.s32.totalorder %s20, %s22
      %p26 = scmp.eq.s32.totalorder %s12, 0
      %p27 = por %p25, %p26
      %p28 = scmp.ne.s32.totalorder %s20, %s22
      %p29 = scmp.eq.s32.totalorder %s17, 1
      %p30 = por %p28, %p29
      %p31 = scmp.ne.s32.totalorder %s22, %s23
      %p32 = scmp.eq.s32.totalorder %s17, 0
      %p33 = por %p31, %p32
      %p34 = scmp.ne.s32.totalorder %s22, %s23
      %p35 = scmp.eq.s32.totalorder %s18, 1
      %p36 = por %p34, %p35
      %p38 = scmp.ne.s32.totalorder %s23, %s37
      %p39 = scmp.eq.s32.totalorder %s18, 0
      %p40 = por %p38, %p39
      %s41 = ssub.s32 %s12, %s19
      %p42 = scmp.eq.s32.totalorder %s41, 0
      %s44 = sadd.s32 %s43, 1
      %s45 = scalar_select %p42, %s43, %s44
      %p48 = pneg %p42
      %p49 = scmp.eq.s32.totalorder %s12, 1
      %p50 = por %p48, %p49
      %p51 = scmp.ne.s32.totalorder %s43, %s46
      %p52 = scmp.eq.s32.totalorder %s12, 0
      %p53 = por %p51, %p52
      %p54 = scmp.ne.s32.totalorder %s43, %s46
      %p55 = scmp.eq.s32.totalorder %s17, 1
      %p56 = por %p54, %p55
      %p57 = scmp.ne.s32.totalorder %s46, %s47
      %p58 = scmp.eq.s32.totalorder %s17, 0
      %p59 = por %p57, %p58
      %p60 = scmp.ne.s32.totalorder %s46, %s47
      %p61 = scmp.eq.s32.totalorder %s18, 1
      %p62 = por %p60, %p61
      %p64 = scmp.ne.s32.totalorder %s47, %s63
      %p65 = scmp.eq.s32.totalorder %s18, 0
      %p66 = por %p64, %p65
      %s67 = ssub.s32 %s12, %s19
      %p68 = scmp.eq.s32.totalorder %s67, 0
      %s70 = sadd.s32 %s69, 1
      %s71 = scalar_select %p68, %s69, %s70
      %p74 = pneg %p68
      %p75 = scmp.eq.s32.totalorder %s12, 1
      %p76 = por %p74, %p75
      %p77 = scmp.ne.s32.totalorder %s69, %s72
      %p78 = scmp.eq.s32.totalorder %s12, 0
      %p79 = por %p77, %p78
      %p80 = scmp.ne.s32.totalorder %s69, %s72
      %p81 = scmp.eq.s32.totalorder %s17, 1
      %p82 = por %p80, %p81
      %p83 = scmp.ne.s32.totalorder %s72, %s73
      %p84 = scmp.eq.s32.totalorder %s17, 0
      %p85 = por %p83, %p84
      %p86 = scmp.ne.s32.totalorder %s72, %s73
      %p87 = scmp.eq.s32.totalorder %s18, 1
      %p88 = por %p86, %p87
      %p90 = scmp.ne.s32.totalorder %s73, %s89
      %p91 = scmp.eq.s32.totalorder %s18, 0
      %p92 = por %p90, %p91
      %s93 = ssub.s32 %s12, %s19
      %p94 = scmp.eq.s32.totalorder %s93, 0
      %s96 = sadd.s32 %s95, 1
      %s97 = scalar_select %p94, %s95, %s96
      %p100 = pneg %p94
      %p101 = scmp.eq.s32.totalorder %s12, 1
      %p102 = por %p100, %p101
      %p103 = scmp.ne.s32.totalorder %s95, %s98
      %p104 = scmp.eq.s32.totalorder %s12, 0
      %p105 = por %p103, %p104
      %p106 = scmp.ne.s32.totalorder %s95, %s98
      %p107 = scmp.eq.s32.totalorder %s17, 1
      %p108 = por %p106, %p107
      %p109 = scmp.ne.s32.totalorder %s98, %s99
      %p110 = scmp.eq.s32.totalorder %s17, 0
      %p111 = por %p109, %p110
      %p112 = scmp.ne.s32.totalorder %s98, %s99
      %p113 = scmp.eq.s32.totalorder %s18, 1
      %p114 = por %p112, %p113
      %p116 = scmp.ne.s32.totalorder %s99, %s115
      %p117 = scmp.eq.s32.totalorder %s18, 0
      %p118 = por %p116, %p117
      %p119 = scmp.le.s32.totalorder 1, %s12
      %p120 = scmp.lt.s32.totalorder %s12, 3
      %p121 = pnand %p119, %p120
      %p122 = pneg %p121
      // Predicated region
      $region9: #{bengio_forward.1} parent=5 // pred_check
        _
      $region10: #{bengio_forward.1} parent=5 // pred_check_branch
        %124 = sbr.rel (%p121) target = $region12
      $region11: #{bengio_forward.1} parent=5 // pred_region
        %s125 = ssub.s32 %s12, 1
        // Predicated region
        $region13: #{bengio_forward.1} parent=11 // pred_check
          %p126 = pneg %p33
        $region14: #{bengio_forward.1} parent=11 // pred_check_branch
          %128 = sbr.rel (%p126) target = $region16
        $region15: #{bengio_forward.1} parent=11 // pred_region
          _
        $region16: #{bengio_forward.1} parent=11 // pred_fallthru
          _
      $region12: #{bengio_forward.1} parent=5 // pred_fallthru
        _
      %p129 = scmp.lt.s32.totalorder %s12, 2
      // Predicated region
      $region17: #{bengio_forward.1} parent=5 // pred_check
        %p130 = pneg %p129
      $region18: #{bengio_forward.1} parent=5 // pred_check_branch
        %132 = sbr.rel (%p130) target = $region20
      $region19: #{bengio_forward.1} parent=5 // pred_region
        // Predicated region
        $region21: #{bengio_forward.1} parent=19 // pred_check
          %p133 = pneg %p53
        $region22: #{bengio_forward.1} parent=19 // pred_check_branch
          %135 = sbr.rel (%p133) target = $region24
        $region23: #{bengio_forward.1} parent=19 // pred_region
          %s136 = sand.u32 %s43, 1
          %s137 = sand.u32 %s43, 1
          %s138 = smul.addr %s137, 768
          %s139 = scalar_lea.vmem [#allocation2], %s138
          %s140 = smul.u32 8, %s12
          %s141 = smul.addr %s140, 4
          %s142 = scalar_lea.vmem %s1, %s141
          // Predicated region
          $region25: #{bengio_forward.1} parent=23 // pred_check
            _
          $region26: #{bengio_forward.1} parent=23 // pred_check_branch
            %144 = sbr.rel (0) target = $region28
          $region27: #{bengio_forward.1} parent=23 // pred_region
            // Predicated region
            $region29: #{bengio_forward.1} parent=27 // pred_check
              _
            $region30: #{bengio_forward.1} parent=27 // pred_check_branch
              %146 = sbr.rel (0) target = $region32
            $region31: #{bengio_forward.1} parent=27 // pred_region
              loop: start=0, step=1, limit=1
              $region33: #{bengio_forward.1} parent=31 // loop_pre_header
                _
              $region34: #{bengio_forward.1} parent=31 // loop_header
                %s148 = sphi 0, %s152
                %p149 = scmp.ge.s32.totalorder %s148, 1
                %s153 = sphi %s142, %s142
                %s154 = sphi %s139, %s139
              $region35: #{bengio_forward.1} parent=31 // loop_header_branch
                %151 = sbr.rel (%p149) target = $region39
              $region36: #{bengio_forward.1} parent=31 // loop_body
                %v155 = vld [vmem:[%s153] sm:$0xff]
                %156 = vst [vmem:[%s154] sm:$0xff] %v155
                %v157 = vld [vmem:[%s153 + $0x8] sm:$0xff]
                %158 = vst [vmem:[%s154 + $0x8] sm:$0xff] %v157
                %v159 = vld [vmem:[%s153 + $0x10] sm:$0xff]
                %160 = vst [vmem:[%s154 + $0x10] sm:$0xff] %v159
                %v161 = vld [vmem:[%s153 + $0x18] sm:$0xff]
                %162 = vst [vmem:[%s154 + $0x18] sm:$0xff] %v161
                %v163 = vld [vmem:[%s153 + $0x40] sm:$0xff]
                %164 = vst [vmem:[%s154 + $0x20] sm:$0xff] %v163
                %v165 = vld [vmem:[%s153 + $0x48] sm:$0xff]
                %166 = vst [vmem:[%s154 + $0x28] sm:$0xff] %v165
                %v167 = vld [vmem:[%s153 + $0x50] sm:$0xff]
                %168 = vst [vmem:[%s154 + $0x30] sm:$0xff] %v167
                %v169 = vld [vmem:[%s153 + $0x58] sm:$0xff]
                %170 = vst [vmem:[%s154 + $0x38] sm:$0xff] %v169
                %v171 = vld [vmem:[%s153 + $0x80] sm:$0xff]
                %172 = vst [vmem:[%s154 + $0x40] sm:$0xff] %v171
                %v173 = vld [vmem:[%s153 + $0x88] sm:$0xff]
                %174 = vst [vmem:[%s154 + $0x48] sm:$0xff] %v173
                %v175 = vld [vmem:[%s153 + $0x90] sm:$0xff]
                %176 = vst [vmem:[%s154 + $0x50] sm:$0xff] %v175
                %v177 = vld [vmem:[%s153 + $0x98] sm:$0xff]
                %178 = vst [vmem:[%s154 + $0x58] sm:$0xff] %v177
                %v179 = vld [vmem:[%s153 + $0xc0] sm:$0xff]
                %180 = vst [vmem:[%s154 + $0x60] sm:$0xff] %v179
                %v181 = vld [vmem:[%s153 + $0xc8] sm:$0xff]
                %182 = vst [vmem:[%s154 + $0x68] sm:$0xff] %v181
                %v183 = vld [vmem:[%s153 + $0xd0] sm:$0xff]
                %184 = vst [vmem:[%s154 + $0x70] sm:$0xff] %v183
                %v185 = vld [vmem:[%s153 + $0xd8] sm:$0xff]
                %186 = vst [vmem:[%s154 + $0x78] sm:$0xff] %v185
                %v187 = vld [vmem:[%s153 + $0x100] sm:$0xff]
                %188 = vst [vmem:[%s154 + $0x80] sm:$0xff] %v187
                %v189 = vld [vmem:[%s153 + $0x108] sm:$0xff]
                %190 = vst [vmem:[%s154 + $0x88] sm:$0xff] %v189
                %v191 = vld [vmem:[%s153 + $0x110] sm:$0xff]
                %192 = vst [vmem:[%s154 + $0x90] sm:$0xff] %v191
                %v193 = vld [vmem:[%s153 + $0x118] sm:$0xff]
                %194 = vst [vmem:[%s154 + $0x98] sm:$0xff] %v193
                %v195 = vld [vmem:[%s153 + $0x140] sm:$0xff]
                %196 = vst [vmem:[%s154 + $0xa0] sm:$0xff] %v195
                %v197 = vld [vmem:[%s153 + $0x148] sm:$0xff]
                %198 = vst [vmem:[%s154 + $0xa8] sm:$0xff] %v197
                %v199 = vld [vmem:[%s153 + $0x150] sm:$0xff]
                %200 = vst [vmem:[%s154 + $0xb0] sm:$0xff] %v199
                %v201 = vld [vmem:[%s153 + $0x158] sm:$0xff]
                %202 = vst [vmem:[%s154 + $0xb8] sm:$0xff] %v201
                %v203 = vld [vmem:[%s153 + $0x180] sm:$0xff]
                %204 = vst [vmem:[%s154 + $0xc0] sm:$0xff] %v203
                %v205 = vld [vmem:[%s153 + $0x188] sm:$0xff]
                %206 = vst [vmem:[%s154 + $0xc8] sm:$0xff] %v205
                %v207 = vld [vmem:[%s153 + $0x190] sm:$0xff]
                %208 = vst [vmem:[%s154 + $0xd0] sm:$0xff] %v207
                %v209 = vld [vmem:[%s153 + $0x198] sm:$0xff]
                %210 = vst [vmem:[%s154 + $0xd8] sm:$0xff] %v209
                %v211 = vld [vmem:[%s153 + $0x1c0] sm:$0xff]
                %212 = vst [vmem:[%s154 + $0xe0] sm:$0xff] %v211
                %v213 = vld [vmem:[%s153 + $0x1c8] sm:$0xff]
                %214 = vst [vmem:[%s154 + $0xe8] sm:$0xff] %v213
                %v215 = vld [vmem:[%s153 + $0x1d0] sm:$0xff]
                %216 = vst [vmem:[%s154 + $0xf0] sm:$0xff] %v215
                %v217 = vld [vmem:[%s153 + $0x1d8] sm:$0xff]
                %218 = vst [vmem:[%s154 + $0xf8] sm:$0xff] %v217
                %v219 = vld [vmem:[%s153 + $0x200] sm:$0xff]
                %220 = vst [vmem:[%s154 + $0x100] sm:$0xff] %v219
                %v221 = vld [vmem:[%s153 + $0x208] sm:$0xff]
                %222 = vst [vmem:[%s154 + $0x108] sm:$0xff] %v221
                %v223 = vld [vmem:[%s153 + $0x210] sm:$0xff]
                %224 = vst [vmem:[%s154 + $0x110] sm:$0xff] %v223
                %v225 = vld [vmem:[%s153 + $0x218] sm:$0xff]
                %226 = vst [vmem:[%s154 + $0x118] sm:$0xff] %v225
                %v227 = vld [vmem:[%s153 + $0x240] sm:$0xff]
                %228 = vst [vmem:[%s154 + $0x120] sm:$0xff] %v227
                %v229 = vld [vmem:[%s153 + $0x248] sm:$0xff]
                %230 = vst [vmem:[%s154 + $0x128] sm:$0xff] %v229
                %v231 = vld [vmem:[%s153 + $0x250] sm:$0xff]
                %232 = vst [vmem:[%s154 + $0x130] sm:$0xff] %v231
                %v233 = vld [vmem:[%s153 + $0x258] sm:$0xff]
                %234 = vst [vmem:[%s154 + $0x138] sm:$0xff] %v233
                %v235 = vld [vmem:[%s153 + $0x280] sm:$0xff]
                %236 = vst [vmem:[%s154 + $0x140] sm:$0xff] %v235
                %v237 = vld [vmem:[%s153 + $0x288] sm:$0xff]
                %238 = vst [vmem:[%s154 + $0x148] sm:$0xff] %v237
                %v239 = vld [vmem:[%s153 + $0x290] sm:$0xff]
                %240 = vst [vmem:[%s154 + $0x150] sm:$0xff] %v239
                %v241 = vld [vmem:[%s153 + $0x298] sm:$0xff]
                %242 = vst [vmem:[%s154 + $0x158] sm:$0xff] %v241
                %v243 = vld [vmem:[%s153 + $0x2c0] sm:$0xff]
                %244 = vst [vmem:[%s154 + $0x160] sm:$0xff] %v243
                %v245 = vld [vmem:[%s153 + $0x2c8] sm:$0xff]
                %246 = vst [vmem:[%s154 + $0x168] sm:$0xff] %v245
                %v247 = vld [vmem:[%s153 + $0x2d0] sm:$0xff]
                %248 = vst [vmem:[%s154 + $0x170] sm:$0xff] %v247
                %v249 = vld [vmem:[%s153 + $0x2d8] sm:$0xff]
                %250 = vst [vmem:[%s154 + $0x178] sm:$0xff] %v249
                %v251 = vld [vmem:[%s153 + $0x300] sm:$0xff]
                %252 = vst [vmem:[%s154 + $0x180] sm:$0xff] %v251
                %v253 = vld [vmem:[%s153 + $0x308] sm:$0xff]
                %254 = vst [vmem:[%s154 + $0x188] sm:$0xff] %v253
                %v255 = vld [vmem:[%s153 + $0x310] sm:$0xff]
                %256 = vst [vmem:[%s154 + $0x190] sm:$0xff] %v255
                %v257 = vld [vmem:[%s153 + $0x318] sm:$0xff]
                %258 = vst [vmem:[%s154 + $0x198] sm:$0xff] %v257
                %v259 = vld [vmem:[%s153 + $0x340] sm:$0xff]
                %260 = vst [vmem:[%s154 + $0x1a0] sm:$0xff] %v259
                %v261 = vld [vmem:[%s153 + $0x348] sm:$0xff]
                %262 = vst [vmem:[%s154 + $0x1a8] sm:$0xff] %v261
                %v263 = vld [vmem:[%s153 + $0x350] sm:$0xff]
                %264 = vst [vmem:[%s154 + $0x1b0] sm:$0xff] %v263
                %v265 = vld [vmem:[%s153 + $0x358] sm:$0xff]
                %266 = vst [vmem:[%s154 + $0x1b8] sm:$0xff] %v265
                %v267 = vld [vmem:[%s153 + $0x380] sm:$0xff]
                %268 = vst [vmem:[%s154 + $0x1c0] sm:$0xff] %v267
                %v269 = vld [vmem:[%s153 + $0x388] sm:$0xff]
                %270 = vst [vmem:[%s154 + $0x1c8] sm:$0xff] %v269
                %v271 = vld [vmem:[%s153 + $0x390] sm:$0xff]
                %272 = vst [vmem:[%s154 + $0x1d0] sm:$0xff] %v271
                %v273 = vld [vmem:[%s153 + $0x398] sm:$0xff]
                %274 = vst [vmem:[%s154 + $0x1d8] sm:$0xff] %v273
                %v275 = vld [vmem:[%s153 + $0x3c0] sm:$0xff]
                %276 = vst [vmem:[%s154 + $0x1e0] sm:$0xff] %v275
                %v277 = vld [vmem:[%s153 + $0x3c8] sm:$0xff]
                %278 = vst [vmem:[%s154 + $0x1e8] sm:$0xff] %v277
                %v279 = vld [vmem:[%s153 + $0x3d0] sm:$0xff]
                %280 = vst [vmem:[%s154 + $0x1f0] sm:$0xff] %v279
                %v281 = vld [vmem:[%s153 + $0x3d8] sm:$0xff]
                %282 = vst [vmem:[%s154 + $0x1f8] sm:$0xff] %v281
                %v283 = vld [vmem:[%s153 + $0x400] sm:$0xff]
                %284 = vst [vmem:[%s154 + $0x200] sm:$0xff] %v283
                %v285 = vld [vmem:[%s153 + $0x408] sm:$0xff]
                %286 = vst [vmem:[%s154 + $0x208] sm:$0xff] %v285
                %v287 = vld [vmem:[%s153 + $0x410] sm:$0xff]
                %288 = vst [vmem:[%s154 + $0x210] sm:$0xff] %v287
                %v289 = vld [vmem:[%s153 + $0x418] sm:$0xff]
                %290 = vst [vmem:[%s154 + $0x218] sm:$0xff] %v289
                %v291 = vld [vmem:[%s153 + $0x440] sm:$0xff]
                %292 = vst [vmem:[%s154 + $0x220] sm:$0xff] %v291
                %v293 = vld [vmem:[%s153 + $0x448] sm:$0xff]
                %294 = vst [vmem:[%s154 + $0x228] sm:$0xff] %v293
                %v295 = vld [vmem:[%s153 + $0x450] sm:$0xff]
                %296 = vst [vmem:[%s154 + $0x230] sm:$0xff] %v295
                %v297 = vld [vmem:[%s153 + $0x458] sm:$0xff]
                %298 = vst [vmem:[%s154 + $0x238] sm:$0xff] %v297
                %v299 = vld [vmem:[%s153 + $0x480] sm:$0xff]
                %300 = vst [vmem:[%s154 + $0x240] sm:$0xff] %v299
                %v301 = vld [vmem:[%s153 + $0x488] sm:$0xff]
                %302 = vst [vmem:[%s154 + $0x248] sm:$0xff] %v301
                %v303 = vld [vmem:[%s153 + $0x490] sm:$0xff]
                %304 = vst [vmem:[%s154 + $0x250] sm:$0xff] %v303
                %v305 = vld [vmem:[%s153 + $0x498] sm:$0xff]
                %306 = vst [vmem:[%s154 + $0x258] sm:$0xff] %v305
                %v307 = vld [vmem:[%s153 + $0x4c0] sm:$0xff]
                %308 = vst [vmem:[%s154 + $0x260] sm:$0xff] %v307
                %v309 = vld [vmem:[%s153 + $0x4c8] sm:$0xff]
                %310 = vst [vmem:[%s154 + $0x268] sm:$0xff] %v309
                %v311 = vld [vmem:[%s153 + $0x4d0] sm:$0xff]
                %312 = vst [vmem:[%s154 + $0x270] sm:$0xff] %v311
                %v313 = vld [vmem:[%s153 + $0x4d8] sm:$0xff]
                %314 = vst [vmem:[%s154 + $0x278] sm:$0xff] %v313
                %v315 = vld [vmem:[%s153 + $0x500] sm:$0xff]
                %316 = vst [vmem:[%s154 + $0x280] sm:$0xff] %v315
                %v317 = vld [vmem:[%s153 + $0x508] sm:$0xff]
                %318 = vst [vmem:[%s154 + $0x288] sm:$0xff] %v317
                %v319 = vld [vmem:[%s153 + $0x510] sm:$0xff]
                %320 = vst [vmem:[%s154 + $0x290] sm:$0xff] %v319
                %v321 = vld [vmem:[%s153 + $0x518] sm:$0xff]
                %322 = vst [vmem:[%s154 + $0x298] sm:$0xff] %v321
                %v323 = vld [vmem:[%s153 + $0x540] sm:$0xff]
                %324 = vst [vmem:[%s154 + $0x2a0] sm:$0xff] %v323
                %v325 = vld [vmem:[%s153 + $0x548] sm:$0xff]
                %326 = vst [vmem:[%s154 + $0x2a8] sm:$0xff] %v325
                %v327 = vld [vmem:[%s153 + $0x550] sm:$0xff]
                %328 = vst [vmem:[%s154 + $0x2b0] sm:$0xff] %v327
                %v329 = vld [vmem:[%s153 + $0x558] sm:$0xff]
                %330 = vst [vmem:[%s154 + $0x2b8] sm:$0xff] %v329
                %v331 = vld [vmem:[%s153 + $0x580] sm:$0xff]
                %332 = vst [vmem:[%s154 + $0x2c0] sm:$0xff] %v331
                %v333 = vld [vmem:[%s153 + $0x588] sm:$0xff]
                %334 = vst [vmem:[%s154 + $0x2c8] sm:$0xff] %v333
                %v335 = vld [vmem:[%s153 + $0x590] sm:$0xff]
                %336 = vst [vmem:[%s154 + $0x2d0] sm:$0xff] %v335
                %v337 = vld [vmem:[%s153 + $0x598] sm:$0xff]
                %338 = vst [vmem:[%s154 + $0x2d8] sm:$0xff] %v337
                %v339 = vld [vmem:[%s153 + $0x5c0] sm:$0xff]
                %340 = vst [vmem:[%s154 + $0x2e0] sm:$0xff] %v339
                %v341 = vld [vmem:[%s153 + $0x5c8] sm:$0xff]
                %342 = vst [vmem:[%s154 + $0x2e8] sm:$0xff] %v341
                %v343 = vld [vmem:[%s153 + $0x5d0] sm:$0xff]
                %344 = vst [vmem:[%s154 + $0x2f0] sm:$0xff] %v343
                %v345 = vld [vmem:[%s153 + $0x5d8] sm:$0xff]
                %346 = vst [vmem:[%s154 + $0x2f8] sm:$0xff] %v345
              $region37: #{bengio_forward.1} parent=31 // loop_footer
                %s152 = sadd.s32 1, %s148
              $region38: #{bengio_forward.1} parent=31 // loop_footer_branch
                %147 = sbr.rel target = $region34
              $region39: #{bengio_forward.1} parent=31 // loop_exit
                _
            $region32: #{bengio_forward.1} parent=27 // pred_fallthru
              _
            // Predicated region
            $region40: #{bengio_forward.1} parent=27 // pred_check
              _
            $region41: #{bengio_forward.1} parent=27 // pred_check_branch
              %348 = sbr.rel target = $region43
            $region42: #{bengio_forward.1} parent=27 // pred_region
              _
            $region43: #{bengio_forward.1} parent=27 // pred_fallthru
              _
          $region28: #{bengio_forward.1} parent=23 // pred_fallthru
            _
          %349 = vnop
        $region24: #{bengio_forward.1} parent=19 // pred_fallthru
          _
        // Predicated region
        $region44: #{bengio_forward.1} parent=19 // pred_check
          %p350 = pneg %p79
        $region45: #{bengio_forward.1} parent=19 // pred_check_branch
          %352 = sbr.rel (%p350) target = $region47
        $region46: #{bengio_forward.1} parent=19 // pred_region
          %s353 = smul.u32 8, %s12
          %p354 = scmp.lt.s32.totalorder %s353, 15
          %s355 = scalar_select %p354, %s353, 15
          %s356 = scalar_lea.vmem %s2, %s355
          %s357 = smul.u32 8, %s12
        $region47: #{bengio_forward.1} parent=19 // pred_fallthru
          _
      $region20: #{bengio_forward.1} parent=5 // pred_fallthru
        _
      %p358 = scmp.le.s32.totalorder 1, %s12
      %p359 = scmp.lt.s32.totalorder %s12, 3
      %p360 = pnand %p358, %p359
      %p361 = pneg %p360
      // Predicated region
      $region48: #{bengio_forward.1} parent=5 // pred_check
        _
      $region49: #{bengio_forward.1} parent=5 // pred_check_branch
        %363 = sbr.rel (%p360) target = $region51
      $region50: #{bengio_forward.1} parent=5 // pred_region
        %s364 = ssub.s32 %s12, 1
        %s365 = sand.u32 %s46, 1
        %s366 = sand.u32 %s46, 1
        %s367 = smul.addr %s366, 768
        %s368 = scalar_lea.vmem [#allocation2], %s367
        // Predicated region
        $region52: #{bengio_forward.1} parent=50 // pred_check
          %p369 = pneg %p59
        $region53: #{bengio_forward.1} parent=50 // pred_check_branch
          %371 = sbr.rel (%p369) target = $region55
        $region54: #{bengio_forward.1} parent=50 // pred_region
          _
        $region55: #{bengio_forward.1} parent=50 // pred_fallthru
          _
        %p372 = pneg %p33
        %p373 = pneg %p30
        %s374 = sand.u32 %s46, 1
        %s375 = sand.u32 %s46, 1
        %s376 = smul.addr %s375, 768
        %s377 = scalar_lea.vmem [#allocation2], %s376
        %p378 = pneg %p59
        %p379 = pneg %p56
        %s380 = smul.u32 8, %s17
        %p381 = scmp.lt.s32.totalorder %s380, 15
        %s382 = scalar_select %p381, %s380, 15
        %s383 = scalar_lea.vmem %s2, %s382
        %p384 = pneg %p85
        %p385 = pneg %p82
        %p386 = pneg %p111
        %p387 = pneg %p108
        %s388 = sand.u32 %s98, 1
        %s389 = scalar_lea.sflag [#allocation4], %s388
        %s390 = sand.u32 %s98, 1
        %s391 = smul.addr %s390, 512
        %s392 = scalar_lea.vmem [#allocation3], %s391
        %s393 = smul.u32 8, %s17
        %s394 = smul.u32 8, %s17
        %p395 = scmp.lt.s32.totalorder %s394, 15
        %s396 = scalar_select %p395, %s394, 15
        %s397 = scalar_lea.vmem %s2, %s396
        %s398 = smul.u32 8, %s17
        %s399 = smul.u32 8, %s17
        %v401 = vld [vmem:[%s0] sm:$0xff]
        %v402 = vld [vmem:[%s0 + $0x8] sm:$0xff]
        %v403 = vld [vmem:[%s0 + $0x10] sm:$0xff]
        %v404 = vld [vmem:[%s0 + $0x18] sm:$0xff]
        %v405 = vld [vmem:[%s0 + $0x20] sm:$0xff]
        %v406 = vld [vmem:[%s0 + $0x28] sm:$0xff]
        %v407 = vld [vmem:[%s0 + $0x30] sm:$0xff]
        %v408 = vld [vmem:[%s0 + $0x38] sm:$0xff]
        %v409 = vld [vmem:[%s0 + $0x40] sm:$0xff]
        %v410 = vld [vmem:[%s0 + $0x48] sm:$0xff]
        %v411 = vld [vmem:[%s0 + $0x50] sm:$0xff]
        %v412 = vld [vmem:[%s0 + $0x58] sm:$0xff]
        %v413 = vld [vmem:[%s0 + $0x60] sm:$0xff]
        %v414 = vld [vmem:[%s0 + $0x68] sm:$0xff]
        %v415 = vld [vmem:[%s0 + $0x70] sm:$0xff]
        %v416 = vld [vmem:[%s0 + $0x78] sm:$0xff]
        %v417 = vld [vmem:[%s368] sm:$0xff]
        %v418 = vld [vmem:[%s368 + $0x8] sm:$0xff]
        %v419 = vld [vmem:[%s368 + $0x10] sm:$0xff]
        %v420 = vld [vmem:[%s368 + $0x18] sm:$0xff]
        %v421 = vld [vmem:[%s368 + $0x20] sm:$0xff]
        %v422 = vld [vmem:[%s368 + $0x28] sm:$0xff]
        %v423 = vld [vmem:[%s368 + $0x30] sm:$0xff]
        %v424 = vld [vmem:[%s368 + $0x38] sm:$0xff]
        %v425 = vld [vmem:[%s368 + $0x40] sm:$0xff]
        %v426 = vld [vmem:[%s368 + $0x48] sm:$0xff]
        %v427 = vld [vmem:[%s368 + $0x50] sm:$0xff]
        %v428 = vld [vmem:[%s368 + $0x58] sm:$0xff]
        %v429 = vld [vmem:[%s368 + $0x60] sm:$0xff]
        %v430 = vld [vmem:[%s368 + $0x68] sm:$0xff]
        %v431 = vld [vmem:[%s368 + $0x70] sm:$0xff]
        %v432 = vld [vmem:[%s368 + $0x78] sm:$0xff]
        %v433 = vld [vmem:[%s368 + $0x80] sm:$0xff]
        %v434 = vld [vmem:[%s368 + $0x88] sm:$0xff]
        %v435 = vld [vmem:[%s368 + $0x90] sm:$0xff]
        %v436 = vld [vmem:[%s368 + $0x98] sm:$0xff]
        %v437 = vld [vmem:[%s368 + $0xa0] sm:$0xff]
        %v438 = vld [vmem:[%s368 + $0xa8] sm:$0xff]
        %v439 = vld [vmem:[%s368 + $0xb0] sm:$0xff]
        %v440 = vld [vmem:[%s368 + $0xb8] sm:$0xff]
        %v441 = vld [vmem:[%s368 + $0xc0] sm:$0xff]
        %v442 = vld [vmem:[%s368 + $0xc8] sm:$0xff]
        %v443 = vld [vmem:[%s368 + $0xd0] sm:$0xff]
        %v444 = vld [vmem:[%s368 + $0xd8] sm:$0xff]
        %v445 = vld [vmem:[%s368 + $0xe0] sm:$0xff]
        %v446 = vld [vmem:[%s368 + $0xe8] sm:$0xff]
        %v447 = vld [vmem:[%s368 + $0xf0] sm:$0xff]
        %v448 = vld [vmem:[%s368 + $0xf8] sm:$0xff]
        %v449 = vld [vmem:[%s368 + $0x100] sm:$0xff]
        %v450 = vld [vmem:[%s368 + $0x108] sm:$0xff]
        %v451 = vld [vmem:[%s368 + $0x110] sm:$0xff]
        %v452 = vld [vmem:[%s368 + $0x118] sm:$0xff]
        %v453 = vld [vmem:[%s368 + $0x120] sm:$0xff]
        %v454 = vld [vmem:[%s368 + $0x128] sm:$0xff]
        %v455 = vld [vmem:[%s368 + $0x130] sm:$0xff]
        %v456 = vld [vmem:[%s368 + $0x138] sm:$0xff]
        %v457 = vld [vmem:[%s368 + $0x140] sm:$0xff]
        %v458 = vld [vmem:[%s368 + $0x148] sm:$0xff]
        %v459 = vld [vmem:[%s368 + $0x150] sm:$0xff]
        %v460 = vld [vmem:[%s368 + $0x158] sm:$0xff]
        %v461 = vld [vmem:[%s368 + $0x160] sm:$0xff]
        %v462 = vld [vmem:[%s368 + $0x168] sm:$0xff]
        %v463 = vld [vmem:[%s368 + $0x170] sm:$0xff]
        %v464 = vld [vmem:[%s368 + $0x178] sm:$0xff]
        %v465 = vld [vmem:[%s368 + $0x180] sm:$0xff]
        %v466 = vld [vmem:[%s368 + $0x188] sm:$0xff]
        %v467 = vld [vmem:[%s368 + $0x190] sm:$0xff]
        %v468 = vld [vmem:[%s368 + $0x198] sm:$0xff]
        %v469 = vld [vmem:[%s368 + $0x1a0] sm:$0xff]
        %v470 = vld [vmem:[%s368 + $0x1a8] sm:$0xff]
        %v471 = vld [vmem:[%s368 + $0x1b0] sm:$0xff]
        %v472 = vld [vmem:[%s368 + $0x1b8] sm:$0xff]
        %v473 = vld [vmem:[%s368 + $0x1c0] sm:$0xff]
        %v474 = vld [vmem:[%s368 + $0x1c8] sm:$0xff]
        %v475 = vld [vmem:[%s368 + $0x1d0] sm:$0xff]
        %v476 = vld [vmem:[%s368 + $0x1d8] sm:$0xff]
        %v477 = vld [vmem:[%s368 + $0x1e0] sm:$0xff]
        %v478 = vld [vmem:[%s368 + $0x1e8] sm:$0xff]
        %v479 = vld [vmem:[%s368 + $0x1f0] sm:$0xff]
        %v480 = vld [vmem:[%s368 + $0x1f8] sm:$0xff]
        %v481 = vld [vmem:[%s368 + $0x200] sm:$0xff]
        %v482 = vld [vmem:[%s368 + $0x208] sm:$0xff]
        %v483 = vld [vmem:[%s368 + $0x210] sm:$0xff]
        %v484 = vld [vmem:[%s368 + $0x218] sm:$0xff]
        %v485 = vld [vmem:[%s368 + $0x220] sm:$0xff]
        %v486 = vld [vmem:[%s368 + $0x228] sm:$0xff]
        %v487 = vld [vmem:[%s368 + $0x230] sm:$0xff]
        %v488 = vld [vmem:[%s368 + $0x238] sm:$0xff]
        %v489 = vld [vmem:[%s368 + $0x240] sm:$0xff]
        %v490 = vld [vmem:[%s368 + $0x248] sm:$0xff]
        %v491 = vld [vmem:[%s368 + $0x250] sm:$0xff]
        %v492 = vld [vmem:[%s368 + $0x258] sm:$0xff]
        %v493 = vld [vmem:[%s368 + $0x260] sm:$0xff]
        %v494 = vld [vmem:[%s368 + $0x268] sm:$0xff]
        %v495 = vld [vmem:[%s368 + $0x270] sm:$0xff]
        %v496 = vld [vmem:[%s368 + $0x278] sm:$0xff]
        %v497 = vld [vmem:[%s368 + $0x280] sm:$0xff]
        %v498 = vld [vmem:[%s368 + $0x288] sm:$0xff]
        %v499 = vld [vmem:[%s368 + $0x290] sm:$0xff]
        %v500 = vld [vmem:[%s368 + $0x298] sm:$0xff]
        %v501 = vld [vmem:[%s368 + $0x2a0] sm:$0xff]
        %v502 = vld [vmem:[%s368 + $0x2a8] sm:$0xff]
        %v503 = vld [vmem:[%s368 + $0x2b0] sm:$0xff]
        %v504 = vld [vmem:[%s368 + $0x2b8] sm:$0xff]
        %v505 = vld [vmem:[%s368 + $0x2c0] sm:$0xff]
        %v506 = vld [vmem:[%s368 + $0x2c8] sm:$0xff]
        %v507 = vld [vmem:[%s368 + $0x2d0] sm:$0xff]
        %v508 = vld [vmem:[%s368 + $0x2d8] sm:$0xff]
        %v509 = vld [vmem:[%s368 + $0x2e0] sm:$0xff]
        %v510 = vld [vmem:[%s368 + $0x2e8] sm:$0xff]
        %v511 = vld [vmem:[%s368 + $0x2f0] sm:$0xff]
        %v512 = vld [vmem:[%s368 + $0x2f8] sm:$0xff]
        %v513 = vld [vmem:[%s397] sm:$0xff]
        %v515 = vperm.slane %v513, 0
        %v516 = vperm.slane %v513, 1
        %v517 = vperm.slane %v513, 2
        %v518 = vperm.slane %v513, 3
        %v519 = vperm.slane %v513, 4
        %v520 = vperm.slane %v513, 5
        %v521 = vperm.slane %v513, 6
        %v522 = vperm.slane %v513, 7
        %v547 = vunpack.c.l.b16 %v401
        %v548 = vunpack.c.h.b16 %v401
        %v549 = vunpack.c.l.b16 %v402
        %v550 = vunpack.c.h.b16 %v402
        %v551 = vunpack.c.l.b16 %v403
        %v552 = vunpack.c.h.b16 %v403
        %v553 = vunpack.c.l.b16 %v404
        %v554 = vunpack.c.h.b16 %v404
        %v555 = vunpack.c.l.b16 %v405
        %v556 = vunpack.c.h.b16 %v405
        %v557 = vunpack.c.l.b16 %v406
        %v558 = vunpack.c.h.b16 %v406
        %v559 = vunpack.c.l.b16 %v407
        %v560 = vunpack.c.h.b16 %v407
        %v561 = vunpack.c.l.b16 %v408
        %v562 = vunpack.c.h.b16 %v408
        %v563 = vunpack.c.l.b16 %v409
        %v564 = vunpack.c.h.b16 %v409
        %v565 = vunpack.c.l.b16 %v410
        %v566 = vunpack.c.h.b16 %v410
        %v567 = vunpack.c.l.b16 %v411
        %v568 = vunpack.c.h.b16 %v411
        %v569 = vunpack.c.l.b16 %v412
        %v570 = vunpack.c.h.b16 %v412
        %v571 = vunpack.c.l.b16 %v413
        %v572 = vunpack.c.h.b16 %v413
        %v573 = vunpack.c.l.b16 %v414
        %v574 = vunpack.c.h.b16 %v414
        %v575 = vunpack.c.l.b16 %v415
        %v576 = vunpack.c.h.b16 %v415
        %v577 = vunpack.c.l.b16 %v416
        %v578 = vunpack.c.h.b16 %v416
        %v579 = vpack.c.b16 %v549, %v547
        %v580 = vpack.c.b16 %v550, %v548
        %v581 = vpack.c.b16 %v553, %v551
        %v582 = vpack.c.b16 %v554, %v552
        %v583 = vpack.c.b16 %v557, %v555
        %v584 = vpack.c.b16 %v558, %v556
        %v585 = vpack.c.b16 %v561, %v559
        %v586 = vpack.c.b16 %v562, %v560
        %v587 = vpack.c.b16 %v565, %v563
        %v588 = vpack.c.b16 %v566, %v564
        %v589 = vpack.c.b16 %v569, %v567
        %v590 = vpack.c.b16 %v570, %v568
        %v591 = vpack.c.b16 %v573, %v571
        %v592 = vpack.c.b16 %v574, %v572
        %v593 = vpack.c.b16 %v577, %v575
        %v594 = vpack.c.b16 %v578, %v576
        %v699 = vunpack.c.l.b16 %v417
        %v700 = vunpack.c.h.b16 %v417
        %v701 = vunpack.c.l.b16 %v418
        %v702 = vunpack.c.h.b16 %v418
        %v703 = vunpack.c.l.b16 %v419
        %v704 = vunpack.c.h.b16 %v419
        %v705 = vunpack.c.l.b16 %v420
        %v706 = vunpack.c.h.b16 %v420
        %v707 = vunpack.c.l.b16 %v421
        %v708 = vunpack.c.h.b16 %v421
        %v709 = vunpack.c.l.b16 %v422
        %v710 = vunpack.c.h.b16 %v422
        %v711 = vunpack.c.l.b16 %v423
        %v712 = vunpack.c.h.b16 %v423
        %v713 = vunpack.c.l.b16 %v424
        %v714 = vunpack.c.h.b16 %v424
        %v715 = vunpack.c.l.b16 %v425
        %v716 = vunpack.c.h.b16 %v425
        %v717 = vunpack.c.l.b16 %v426
        %v718 = vunpack.c.h.b16 %v426
        %v719 = vunpack.c.l.b16 %v427
        %v720 = vunpack.c.h.b16 %v427
        %v721 = vunpack.c.l.b16 %v428
        %v722 = vunpack.c.h.b16 %v428
        %v723 = vunpack.c.l.b16 %v429
        %v724 = vunpack.c.h.b16 %v429
        %v725 = vunpack.c.l.b16 %v430
        %v726 = vunpack.c.h.b16 %v430
        %v727 = vunpack.c.l.b16 %v431
        %v728 = vunpack.c.h.b16 %v431
        %v729 = vunpack.c.l.b16 %v432
        %v730 = vunpack.c.h.b16 %v432
        %v731 = vunpack.c.l.b16 %v433
        %v732 = vunpack.c.h.b16 %v433
        %v733 = vunpack.c.l.b16 %v434
        %v734 = vunpack.c.h.b16 %v434
        %v735 = vunpack.c.l.b16 %v435
        %v736 = vunpack.c.h.b16 %v435
        %v737 = vunpack.c.l.b16 %v436
        %v738 = vunpack.c.h.b16 %v436
        %v739 = vunpack.c.l.b16 %v437
        %v740 = vunpack.c.h.b16 %v437
        %v741 = vunpack.c.l.b16 %v438
        %v742 = vunpack.c.h.b16 %v438
        %v743 = vunpack.c.l.b16 %v439
        %v744 = vunpack.c.h.b16 %v439
        %v745 = vunpack.c.l.b16 %v440
        %v746 = vunpack.c.h.b16 %v440
        %v747 = vunpack.c.l.b16 %v441
        %v748 = vunpack.c.h.b16 %v441
        %v749 = vunpack.c.l.b16 %v442
        %v750 = vunpack.c.h.b16 %v442
        %v751 = vunpack.c.l.b16 %v443
        %v752 = vunpack.c.h.b16 %v443
        %v753 = vunpack.c.l.b16 %v444
        %v754 = vunpack.c.h.b16 %v444
        %v755 = vunpack.c.l.b16 %v445
        %v756 = vunpack.c.h.b16 %v445
        %v757 = vunpack.c.l.b16 %v446
        %v758 = vunpack.c.h.b16 %v446
        %v759 = vunpack.c.l.b16 %v447
        %v760 = vunpack.c.h.b16 %v447
        %v761 = vunpack.c.l.b16 %v448
        %v762 = vunpack.c.h.b16 %v448
        %v763 = vunpack.c.l.b16 %v449
        %v764 = vunpack.c.h.b16 %v449
        %v765 = vunpack.c.l.b16 %v450
        %v766 = vunpack.c.h.b16 %v450
        %v767 = vunpack.c.l.b16 %v451
        %v768 = vunpack.c.h.b16 %v451
        %v769 = vunpack.c.l.b16 %v452
        %v770 = vunpack.c.h.b16 %v452
        %v771 = vunpack.c.l.b16 %v453
        %v772 = vunpack.c.h.b16 %v453
        %v773 = vunpack.c.l.b16 %v454
        %v774 = vunpack.c.h.b16 %v454
        %v775 = vunpack.c.l.b16 %v455
        %v776 = vunpack.c.h.b16 %v455
        %v777 = vunpack.c.l.b16 %v456
        %v778 = vunpack.c.h.b16 %v456
        %v779 = vunpack.c.l.b16 %v457
        %v780 = vunpack.c.h.b16 %v457
        %v781 = vunpack.c.l.b16 %v458
        %v782 = vunpack.c.h.b16 %v458
        %v783 = vunpack.c.l.b16 %v459
        %v784 = vunpack.c.h.b16 %v459
        %v785 = vunpack.c.l.b16 %v460
        %v786 = vunpack.c.h.b16 %v460
        %v787 = vunpack.c.l.b16 %v461
        %v788 = vunpack.c.h.b16 %v461
        %v789 = vunpack.c.l.b16 %v462
        %v790 = vunpack.c.h.b16 %v462
        %v791 = vunpack.c.l.b16 %v463
        %v792 = vunpack.c.h.b16 %v463
        %v793 = vunpack.c.l.b16 %v464
        %v794 = vunpack.c.h.b16 %v464
        %v795 = vunpack.c.l.b16 %v465
        %v796 = vunpack.c.h.b16 %v465
        %v797 = vunpack.c.l.b16 %v466
        %v798 = vunpack.c.h.b16 %v466
        %v799 = vunpack.c.l.b16 %v467
        %v800 = vunpack.c.h.b16 %v467
        %v801 = vunpack.c.l.b16 %v468
        %v802 = vunpack.c.h.b16 %v468
        %v803 = vunpack.c.l.b16 %v469
        %v804 = vunpack.c.h.b16 %v469
        %v805 = vunpack.c.l.b16 %v470
        %v806 = vunpack.c.h.b16 %v470
        %v807 = vunpack.c.l.b16 %v471
        %v808 = vunpack.c.h.b16 %v471
        %v809 = vunpack.c.l.b16 %v472
        %v810 = vunpack.c.h.b16 %v472
        %v811 = vunpack.c.l.b16 %v473
        %v812 = vunpack.c.h.b16 %v473
        %v813 = vunpack.c.l.b16 %v474
        %v814 = vunpack.c.h.b16 %v474
        %v815 = vunpack.c.l.b16 %v475
        %v816 = vunpack.c.h.b16 %v475
        %v817 = vunpack.c.l.b16 %v476
        %v818 = vunpack.c.h.b16 %v476
        %v819 = vunpack.c.l.b16 %v477
        %v820 = vunpack.c.h.b16 %v477
        %v821 = vunpack.c.l.b16 %v478
        %v822 = vunpack.c.h.b16 %v478
        %v823 = vunpack.c.l.b16 %v479
        %v824 = vunpack.c.h.b16 %v479
        %v825 = vunpack.c.l.b16 %v480
        %v826 = vunpack.c.h.b16 %v480
        %v827 = vunpack.c.l.b16 %v481
        %v828 = vunpack.c.h.b16 %v481
        %v829 = vunpack.c.l.b16 %v482
        %v830 = vunpack.c.h.b16 %v482
        %v831 = vunpack.c.l.b16 %v483
        %v832 = vunpack.c.h.b16 %v483
        %v833 = vunpack.c.l.b16 %v484
        %v834 = vunpack.c.h.b16 %v484
        %v835 = vunpack.c.l.b16 %v485
        %v836 = vunpack.c.h.b16 %v485
        %v837 = vunpack.c.l.b16 %v486
        %v838 = vunpack.c.h.b16 %v486
        %v839 = vunpack.c.l.b16 %v487
        %v840 = vunpack.c.h.b16 %v487
        %v841 = vunpack.c.l.b16 %v488
        %v842 = vunpack.c.h.b16 %v488
        %v843 = vunpack.c.l.b16 %v489
        %v844 = vunpack.c.h.b16 %v489
        %v845 = vunpack.c.l.b16 %v490
        %v846 = vunpack.c.h.b16 %v490
        %v847 = vunpack.c.l.b16 %v491
        %v848 = vunpack.c.h.b16 %v491
        %v849 = vunpack.c.l.b16 %v492
        %v850 = vunpack.c.h.b16 %v492
        %v851 = vunpack.c.l.b16 %v493
        %v852 = vunpack.c.h.b16 %v493
        %v853 = vunpack.c.l.b16 %v494
        %v854 = vunpack.c.h.b16 %v494
        %v855 = vunpack.c.l.b16 %v495
        %v856 = vunpack.c.h.b16 %v495
        %v857 = vunpack.c.l.b16 %v496
        %v858 = vunpack.c.h.b16 %v496
        %v859 = vunpack.c.l.b16 %v497
        %v860 = vunpack.c.h.b16 %v497
        %v861 = vunpack.c.l.b16 %v498
        %v862 = vunpack.c.h.b16 %v498
        %v863 = vunpack.c.l.b16 %v499
        %v864 = vunpack.c.h.b16 %v499
        %v865 = vunpack.c.l.b16 %v500
        %v866 = vunpack.c.h.b16 %v500
        %v867 = vunpack.c.l.b16 %v501
        %v868 = vunpack.c.h.b16 %v501
        %v869 = vunpack.c.l.b16 %v502
        %v870 = vunpack.c.h.b16 %v502
        %v871 = vunpack.c.l.b16 %v503
        %v872 = vunpack.c.h.b16 %v503
        %v873 = vunpack.c.l.b16 %v504
        %v874 = vunpack.c.h.b16 %v504
        %v875 = vunpack.c.l.b16 %v505
        %v876 = vunpack.c.h.b16 %v505
        %v877 = vunpack.c.l.b16 %v506
        %v878 = vunpack.c.h.b16 %v506
        %v879 = vunpack.c.l.b16 %v507
        %v880 = vunpack.c.h.b16 %v507
        %v881 = vunpack.c.l.b16 %v508
        %v882 = vunpack.c.h.b16 %v508
        %v883 = vunpack.c.l.b16 %v509
        %v884 = vunpack.c.h.b16 %v509
        %v885 = vunpack.c.l.b16 %v510
        %v886 = vunpack.c.h.b16 %v510
        %v887 = vunpack.c.l.b16 %v511
        %v888 = vunpack.c.h.b16 %v511
        %v889 = vunpack.c.l.b16 %v512
        %v890 = vunpack.c.h.b16 %v512
        %v891 = vpack.c.b16 %v707, %v699
        %v892 = vpack.c.b16 %v708, %v700
        %v893 = vpack.c.b16 %v709, %v701
        %v894 = vpack.c.b16 %v710, %v702
        %v895 = vpack.c.b16 %v711, %v703
        %v896 = vpack.c.b16 %v712, %v704
        %v897 = vpack.c.b16 %v713, %v705
        %v898 = vpack.c.b16 %v714, %v706
        %v899 = vpack.c.b16 %v723, %v715
        %v900 = vpack.c.b16 %v724, %v716
        %v901 = vpack.c.b16 %v725, %v717
        %v902 = vpack.c.b16 %v726, %v718
        %v903 = vpack.c.b16 %v727, %v719
        %v904 = vpack.c.b16 %v728, %v720
        %v905 = vpack.c.b16 %v729, %v721
        %v906 = vpack.c.b16 %v730, %v722
        %v907 = vpack.c.b16 %v739, %v731
        %v908 = vpack.c.b16 %v740, %v732
        %v909 = vpack.c.b16 %v741, %v733
        %v910 = vpack.c.b16 %v742, %v734
        %v911 = vpack.c.b16 %v743, %v735
        %v912 = vpack.c.b16 %v744, %v736
        %v913 = vpack.c.b16 %v745, %v737
        %v914 = vpack.c.b16 %v746, %v738
        %v915 = vpack.c.b16 %v755, %v747
        %v916 = vpack.c.b16 %v756, %v748
        %v917 = vpack.c.b16 %v757, %v749
        %v918 = vpack.c.b16 %v758, %v750
        %v919 = vpack.c.b16 %v759, %v751
        %v920 = vpack.c.b16 %v760, %v752
        %v921 = vpack.c.b16 %v761, %v753
        %v922 = vpack.c.b16 %v762, %v754
        %v923 = vpack.c.b16 %v771, %v763
        %v924 = vpack.c.b16 %v772, %v764
        %v925 = vpack.c.b16 %v773, %v765
        %v926 = vpack.c.b16 %v774, %v766
        %v927 = vpack.c.b16 %v775, %v767
        %v928 = vpack.c.b16 %v776, %v768
        %v929 = vpack.c.b16 %v777, %v769
        %v930 = vpack.c.b16 %v778, %v770
        %v931 = vpack.c.b16 %v787, %v779
        %v932 = vpack.c.b16 %v788, %v780
        %v933 = vpack.c.b16 %v789, %v781
        %v934 = vpack.c.b16 %v790, %v782
        %v935 = vpack.c.b16 %v791, %v783
        %v936 = vpack.c.b16 %v792, %v784
        %v937 = vpack.c.b16 %v793, %v785
        %v938 = vpack.c.b16 %v794, %v786
        %v939 = vpack.c.b16 %v803, %v795
        %v940 = vpack.c.b16 %v804, %v796
        %v941 = vpack.c.b16 %v805, %v797
        %v942 = vpack.c.b16 %v806, %v798
        %v943 = vpack.c.b16 %v807, %v799
        %v944 = vpack.c.b16 %v808, %v800
        %v945 = vpack.c.b16 %v809, %v801
        %v946 = vpack.c.b16 %v810, %v802
        %v947 = vpack.c.b16 %v819, %v811
        %v948 = vpack.c.b16 %v820, %v812
        %v949 = vpack.c.b16 %v821, %v813
        %v950 = vpack.c.b16 %v822, %v814
        %v951 = vpack.c.b16 %v823, %v815
        %v952 = vpack.c.b16 %v824, %v816
        %v953 = vpack.c.b16 %v825, %v817
        %v954 = vpack.c.b16 %v826, %v818
        %v955 = vpack.c.b16 %v835, %v827
        %v956 = vpack.c.b16 %v836, %v828
        %v957 = vpack.c.b16 %v837, %v829
        %v958 = vpack.c.b16 %v838, %v830
        %v959 = vpack.c.b16 %v839, %v831
        %v960 = vpack.c.b16 %v840, %v832
        %v961 = vpack.c.b16 %v841, %v833
        %v962 = vpack.c.b16 %v842, %v834
        %v963 = vpack.c.b16 %v851, %v843
        %v964 = vpack.c.b16 %v852, %v844
        %v965 = vpack.c.b16 %v853, %v845
        %v966 = vpack.c.b16 %v854, %v846
        %v967 = vpack.c.b16 %v855, %v847
        %v968 = vpack.c.b16 %v856, %v848
        %v969 = vpack.c.b16 %v857, %v849
        %v970 = vpack.c.b16 %v858, %v850
        %v971 = vpack.c.b16 %v867, %v859
        %v972 = vpack.c.b16 %v868, %v860
        %v973 = vpack.c.b16 %v869, %v861
        %v974 = vpack.c.b16 %v870, %v862
        %v975 = vpack.c.b16 %v871, %v863
        %v976 = vpack.c.b16 %v872, %v864
        %v977 = vpack.c.b16 %v873, %v865
        %v978 = vpack.c.b16 %v874, %v866
        %v979 = vpack.c.b16 %v883, %v875
        %v980 = vpack.c.b16 %v884, %v876
        %v981 = vpack.c.b16 %v885, %v877
        %v982 = vpack.c.b16 %v886, %v878
        %v983 = vpack.c.b16 %v887, %v879
        %v984 = vpack.c.b16 %v888, %v880
        %v985 = vpack.c.b16 %v889, %v881
        %v986 = vpack.c.b16 %v890, %v882
        %vm1083 = vcmask 523264
        %v1085 = vsel %vm1083, %v580, 0
        %v1088 = vsel %vm1083, %v582, 0
        %v1091 = vsel %vm1083, %v584, 0
        %v1094 = vsel %vm1083, %v586, 0
        %v1097 = vsel %vm1083, %v588, 0
        %v1100 = vsel %vm1083, %v590, 0
        %v1103 = vsel %vm1083, %v592, 0
        %v1106 = vsel %vm1083, %v594, 0
        %1108 = vmatpush.bf16.msra.mxu0 %v947
        %1109 = vmatpush.bf16.msra.mxu0 %v939
        %1110 = vmatpush.bf16.msra.mxu0 %v931
        %1111 = vmatpush.bf16.msra.mxu0 %v923
        %1112 = vmatpush.bf16.msra.mxu0 %v915
        %1113 = vmatpush.bf16.msra.mxu0 %v907
        %1114 = vmatpush.bf16.msra.mxu0 %v899
        %1115 = vmatpush.bf16.msra.mxu0 %v891
        %1116 = vmatmul.bf16.gmra.mxu0 %v579
        %v1117 = vpop.f32.mrf.mxu0
        %v1118 = vadd.f32 %v515, %v1117
        %v1119 = vpop.f32.mrf.mxu0
        %v1120 = vadd.f32 %v515, %v1119
        %1121 = vmatmul.bf16.gmra.mxu0 %v581
        %v1122 = vpop.f32.mrf.mxu0
        %v1123 = vadd.f32 %v515, %v1122
        %v1124 = vpop.f32.mrf.mxu0
        %v1125 = vadd.f32 %v515, %v1124
        %1126 = vmatmul.bf16.gmra.mxu0 %v583
        %v1127 = vpop.f32.mrf.mxu0
        %v1128 = vadd.f32 %v515, %v1127
        %v1129 = vpop.f32.mrf.mxu0
        %v1130 = vadd.f32 %v515, %v1129
        %1131 = vmatmul.bf16.gmra.mxu0 %v585
        %v1132 = vpop.f32.mrf.mxu0
        %v1133 = vadd.f32 %v515, %v1132
        %v1134 = vpop.f32.mrf.mxu0
        %v1135 = vadd.f32 %v515, %v1134
        %1136 = vmatmul.bf16.gmra.mxu0 %v587
        %v1137 = vpop.f32.mrf.mxu0
        %v1138 = vadd.f32 %v515, %v1137
        %v1139 = vpop.f32.mrf.mxu0
        %v1140 = vadd.f32 %v515, %v1139
        %1141 = vmatmul.bf16.gmra.mxu0 %v589
        %v1142 = vpop.f32.mrf.mxu0
        %v1143 = vadd.f32 %v515, %v1142
        %v1144 = vpop.f32.mrf.mxu0
        %v1145 = vadd.f32 %v515, %v1144
        %1146 = vmatmul.bf16.gmra.mxu0 %v591
        %v1147 = vpop.f32.mrf.mxu0
        %v1148 = vadd.f32 %v515, %v1147
        %v1149 = vpop.f32.mrf.mxu0
        %v1150 = vadd.f32 %v515, %v1149
        %1151 = vmatmul.bf16.gmra.mxu0 %v593
        %v1152 = vpop.f32.mrf.mxu0
        %v1153 = vadd.f32 %v515, %v1152
        %v1154 = vpop.f32.mrf.mxu0
        %v1155 = vadd.f32 %v515, %v1154
        %1156 = vdwg.mxu0
        %1157 = vmatpush.bf16.msra.mxu0 0
        %1158 = vmatpush.bf16.msra.mxu0 0
        %1159 = vmatpush.bf16.msra.mxu0 0
        %1160 = vmatpush.bf16.msra.mxu0 0
        %1161 = vmatpush.bf16.msra.mxu0 %v979
        %1162 = vmatpush.bf16.msra.mxu0 %v971
        %1163 = vmatpush.bf16.msra.mxu0 %v963
        %1164 = vmatpush.bf16.msra.mxu0 %v955
        %1165 = vmatmul.bf16.gmra.mxu0 %v1085
        %v1166 = vpop.f32.mrf.mxu0
        %v1167 = vadd.f32 %v1118, %v1166
        %v1168 = vpop.f32.mrf.mxu0
        %v1169 = vadd.f32 %v1120, %v1168
        %1170 = vmatmul.bf16.gmra.mxu0 %v1088
        %v1171 = vpop.f32.mrf.mxu0
        %v1172 = vadd.f32 %v1123, %v1171
        %v1173 = vpop.f32.mrf.mxu0
        %v1174 = vadd.f32 %v1125, %v1173
        %1175 = vmatmul.bf16.gmra.mxu0 %v1091
        %v1176 = vpop.f32.mrf.mxu0
        %v1177 = vadd.f32 %v1128, %v1176
        %v1178 = vpop.f32.mrf.mxu0
        %v1179 = vadd.f32 %v1130, %v1178
        %1180 = vmatmul.bf16.gmra.mxu0 %v1094
        %v1181 = vpop.f32.mrf.mxu0
        %v1182 = vadd.f32 %v1133, %v1181
        %v1183 = vpop.f32.mrf.mxu0
        %v1184 = vadd.f32 %v1135, %v1183
        %1185 = vmatmul.bf16.gmra.mxu0 %v1097
        %v1186 = vpop.f32.mrf.mxu0
        %v1187 = vadd.f32 %v1138, %v1186
        %v1188 = vpop.f32.mrf.mxu0
        %v1189 = vadd.f32 %v1140, %v1188
        %1190 = vmatmul.bf16.gmra.mxu0 %v1100
        %v1191 = vpop.f32.mrf.mxu0
        %v1192 = vadd.f32 %v1143, %v1191
        %v1193 = vpop.f32.mrf.mxu0
        %v1194 = vadd.f32 %v1145, %v1193
        %1195 = vmatmul.bf16.gmra.mxu0 %v1103
        %v1196 = vpop.f32.mrf.mxu0
        %v1197 = vadd.f32 %v1148, %v1196
        %v1198 = vpop.f32.mrf.mxu0
        %v1199 = vadd.f32 %v1150, %v1198
        %1200 = vmatmul.bf16.gmra.mxu0 %v1106
        %v1201 = vpop.f32.mrf.mxu0
        %v1202 = vadd.f32 %v1153, %v1201
        %v1203 = vpop.f32.mrf.mxu0
        %v1204 = vadd.f32 %v1155, %v1203
        %1205 = vdwg.mxu0
        %1206 = vmatpush.bf16.msra.mxu0 %v948
        %1207 = vmatpush.bf16.msra.mxu0 %v940
        %1208 = vmatpush.bf16.msra.mxu0 %v932
        %1209 = vmatpush.bf16.msra.mxu0 %v924
        %1210 = vmatpush.bf16.msra.mxu0 %v916
        %1211 = vmatpush.bf16.msra.mxu0 %v908
        %1212 = vmatpush.bf16.msra.mxu0 %v900
        %1213 = vmatpush.bf16.msra.mxu0 %v892
        %1214 = vmatmul.bf16.gmra.mxu0 %v579
        %v1215 = vpop.f32.mrf.mxu0
        %v1216 = vadd.f32 %v516, %v1215
        %v1217 = vpop.f32.mrf.mxu0
        %v1218 = vadd.f32 %v516, %v1217
        %1219 = vmatmul.bf16.gmra.mxu0 %v581
        %v1220 = vpop.f32.mrf.mxu0
        %v1221 = vadd.f32 %v516, %v1220
        %v1222 = vpop.f32.mrf.mxu0
        %v1223 = vadd.f32 %v516, %v1222
        %1224 = vmatmul.bf16.gmra.mxu0 %v583
        %v1225 = vpop.f32.mrf.mxu0
        %v1226 = vadd.f32 %v516, %v1225
        %v1227 = vpop.f32.mrf.mxu0
        %v1228 = vadd.f32 %v516, %v1227
        %1229 = vmatmul.bf16.gmra.mxu0 %v585
        %v1230 = vpop.f32.mrf.mxu0
        %v1231 = vadd.f32 %v516, %v1230
        %v1232 = vpop.f32.mrf.mxu0
        %v1233 = vadd.f32 %v516, %v1232
        %1234 = vmatmul.bf16.gmra.mxu0 %v587
        %v1235 = vpop.f32.mrf.mxu0
        %v1236 = vadd.f32 %v516, %v1235
        %v1237 = vpop.f32.mrf.mxu0
        %v1238 = vadd.f32 %v516, %v1237
        %1239 = vmatmul.bf16.gmra.mxu0 %v589
        %v1240 = vpop.f32.mrf.mxu0
        %v1241 = vadd.f32 %v516, %v1240
        %v1242 = vpop.f32.mrf.mxu0
        %v1243 = vadd.f32 %v516, %v1242
        %1244 = vmatmul.bf16.gmra.mxu0 %v591
        %v1245 = vpop.f32.mrf.mxu0
        %v1246 = vadd.f32 %v516, %v1245
        %v1247 = vpop.f32.mrf.mxu0
        %v1248 = vadd.f32 %v516, %v1247
        %1249 = vmatmul.bf16.gmra.mxu0 %v593
        %v1250 = vpop.f32.mrf.mxu0
        %v1251 = vadd.f32 %v516, %v1250
        %v1252 = vpop.f32.mrf.mxu0
        %v1253 = vadd.f32 %v516, %v1252
        %1254 = vdwg.mxu0
        %1255 = vmatpush.bf16.msra.mxu0 0
        %1256 = vmatpush.bf16.msra.mxu0 0
        %1257 = vmatpush.bf16.msra.mxu0 0
        %1258 = vmatpush.bf16.msra.mxu0 0
        %1259 = vmatpush.bf16.msra.mxu0 %v980
        %1260 = vmatpush.bf16.msra.mxu0 %v972
        %1261 = vmatpush.bf16.msra.mxu0 %v964
        %1262 = vmatpush.bf16.msra.mxu0 %v956
        %1263 = vmatmul.bf16.gmra.mxu0 %v1085
        %v1264 = vpop.f32.mrf.mxu0
        %v1265 = vadd.f32 %v1216, %v1264
        %v1266 = vpop.f32.mrf.mxu0
        %v1267 = vadd.f32 %v1218, %v1266
        %1268 = vmatmul.bf16.gmra.mxu0 %v1088
        %v1269 = vpop.f32.mrf.mxu0
        %v1270 = vadd.f32 %v1221, %v1269
        %v1271 = vpop.f32.mrf.mxu0
        %v1272 = vadd.f32 %v1223, %v1271
        %1273 = vmatmul.bf16.gmra.mxu0 %v1091
        %v1274 = vpop.f32.mrf.mxu0
        %v1275 = vadd.f32 %v1226, %v1274
        %v1276 = vpop.f32.mrf.mxu0
        %v1277 = vadd.f32 %v1228, %v1276
        %1278 = vmatmul.bf16.gmra.mxu0 %v1094
        %v1279 = vpop.f32.mrf.mxu0
        %v1280 = vadd.f32 %v1231, %v1279
        %v1281 = vpop.f32.mrf.mxu0
        %v1282 = vadd.f32 %v1233, %v1281
        %1283 = vmatmul.bf16.gmra.mxu0 %v1097
        %v1284 = vpop.f32.mrf.mxu0
        %v1285 = vadd.f32 %v1236, %v1284
        %v1286 = vpop.f32.mrf.mxu0
        %v1287 = vadd.f32 %v1238, %v1286
        %1288 = vmatmul.bf16.gmra.mxu0 %v1100
        %v1289 = vpop.f32.mrf.mxu0
        %v1290 = vadd.f32 %v1241, %v1289
        %v1291 = vpop.f32.mrf.mxu0
        %v1292 = vadd.f32 %v1243, %v1291
        %1293 = vmatmul.bf16.gmra.mxu0 %v1103
        %v1294 = vpop.f32.mrf.mxu0
        %v1295 = vadd.f32 %v1246, %v1294
        %v1296 = vpop.f32.mrf.mxu0
        %v1297 = vadd.f32 %v1248, %v1296
        %1298 = vmatmul.bf16.gmra.mxu0 %v1106
        %v1299 = vpop.f32.mrf.mxu0
        %v1300 = vadd.f32 %v1251, %v1299
        %v1301 = vpop.f32.mrf.mxu0
        %v1302 = vadd.f32 %v1253, %v1301
        %1303 = vdwg.mxu0
        %1304 = vmatpush.bf16.msra.mxu0 %v949
        %1305 = vmatpush.bf16.msra.mxu0 %v941
        %1306 = vmatpush.bf16.msra.mxu0 %v933
        %1307 = vmatpush.bf16.msra.mxu0 %v925
        %1308 = vmatpush.bf16.msra.mxu0 %v917
        %1309 = vmatpush.bf16.msra.mxu0 %v909
        %1310 = vmatpush.bf16.msra.mxu0 %v901
        %1311 = vmatpush.bf16.msra.mxu0 %v893
        %1312 = vmatmul.bf16.gmra.mxu0 %v579
        %v1313 = vpop.f32.mrf.mxu0
        %v1314 = vadd.f32 %v517, %v1313
        %v1315 = vpop.f32.mrf.mxu0
        %v1316 = vadd.f32 %v517, %v1315
        %1317 = vmatmul.bf16.gmra.mxu0 %v581
        %v1318 = vpop.f32.mrf.mxu0
        %v1319 = vadd.f32 %v517, %v1318
        %v1320 = vpop.f32.mrf.mxu0
        %v1321 = vadd.f32 %v517, %v1320
        %1322 = vmatmul.bf16.gmra.mxu0 %v583
        %v1323 = vpop.f32.mrf.mxu0
        %v1324 = vadd.f32 %v517, %v1323
        %v1325 = vpop.f32.mrf.mxu0
        %v1326 = vadd.f32 %v517, %v1325
        %1327 = vmatmul.bf16.gmra.mxu0 %v585
        %v1328 = vpop.f32.mrf.mxu0
        %v1329 = vadd.f32 %v517, %v1328
        %v1330 = vpop.f32.mrf.mxu0
        %v1331 = vadd.f32 %v517, %v1330
        %1332 = vmatmul.bf16.gmra.mxu0 %v587
        %v1333 = vpop.f32.mrf.mxu0
        %v1334 = vadd.f32 %v517, %v1333
        %v1335 = vpop.f32.mrf.mxu0
        %v1336 = vadd.f32 %v517, %v1335
        %1337 = vmatmul.bf16.gmra.mxu0 %v589
        %v1338 = vpop.f32.mrf.mxu0
        %v1339 = vadd.f32 %v517, %v1338
        %v1340 = vpop.f32.mrf.mxu0
        %v1341 = vadd.f32 %v517, %v1340
        %1342 = vmatmul.bf16.gmra.mxu0 %v591
        %v1343 = vpop.f32.mrf.mxu0
        %v1344 = vadd.f32 %v517, %v1343
        %v1345 = vpop.f32.mrf.mxu0
        %v1346 = vadd.f32 %v517, %v1345
        %1347 = vmatmul.bf16.gmra.mxu0 %v593
        %v1348 = vpop.f32.mrf.mxu0
        %v1349 = vadd.f32 %v517, %v1348
        %v1350 = vpop.f32.mrf.mxu0
        %v1351 = vadd.f32 %v517, %v1350
        %1352 = vdwg.mxu0
        %1353 = vmatpush.bf16.msra.mxu0 0
        %1354 = vmatpush.bf16.msra.mxu0 0
        %1355 = vmatpush.bf16.msra.mxu0 0
        %1356 = vmatpush.bf16.msra.mxu0 0
        %1357 = vmatpush.bf16.msra.mxu0 %v981
        %1358 = vmatpush.bf16.msra.mxu0 %v973
        %1359 = vmatpush.bf16.msra.mxu0 %v965
        %1360 = vmatpush.bf16.msra.mxu0 %v957
        %1361 = vmatmul.bf16.gmra.mxu0 %v1085
        %v1362 = vpop.f32.mrf.mxu0
        %v1363 = vadd.f32 %v1314, %v1362
        %v1364 = vpop.f32.mrf.mxu0
        %v1365 = vadd.f32 %v1316, %v1364
        %1366 = vmatmul.bf16.gmra.mxu0 %v1088
        %v1367 = vpop.f32.mrf.mxu0
        %v1368 = vadd.f32 %v1319, %v1367
        %v1369 = vpop.f32.mrf.mxu0
        %v1370 = vadd.f32 %v1321, %v1369
        %1371 = vmatmul.bf16.gmra.mxu0 %v1091
        %v1372 = vpop.f32.mrf.mxu0
        %v1373 = vadd.f32 %v1324, %v1372
        %v1374 = vpop.f32.mrf.mxu0
        %v1375 = vadd.f32 %v1326, %v1374
        %1376 = vmatmul.bf16.gmra.mxu0 %v1094
        %v1377 = vpop.f32.mrf.mxu0
        %v1378 = vadd.f32 %v1329, %v1377
        %v1379 = vpop.f32.mrf.mxu0
        %v1380 = vadd.f32 %v1331, %v1379
        %1381 = vmatmul.bf16.gmra.mxu0 %v1097
        %v1382 = vpop.f32.mrf.mxu0
        %v1383 = vadd.f32 %v1334, %v1382
        %v1384 = vpop.f32.mrf.mxu0
        %v1385 = vadd.f32 %v1336, %v1384
        %1386 = vmatmul.bf16.gmra.mxu0 %v1100
        %v1387 = vpop.f32.mrf.mxu0
        %v1388 = vadd.f32 %v1339, %v1387
        %v1389 = vpop.f32.mrf.mxu0
        %v1390 = vadd.f32 %v1341, %v1389
        %1391 = vmatmul.bf16.gmra.mxu0 %v1103
        %v1392 = vpop.f32.mrf.mxu0
        %v1393 = vadd.f32 %v1344, %v1392
        %v1394 = vpop.f32.mrf.mxu0
        %v1395 = vadd.f32 %v1346, %v1394
        %1396 = vmatmul.bf16.gmra.mxu0 %v1106
        %v1397 = vpop.f32.mrf.mxu0
        %v1398 = vadd.f32 %v1349, %v1397
        %v1399 = vpop.f32.mrf.mxu0
        %v1400 = vadd.f32 %v1351, %v1399
        %1401 = vdwg.mxu0
        %1402 = vmatpush.bf16.msra.mxu0 %v950
        %1403 = vmatpush.bf16.msra.mxu0 %v942
        %1404 = vmatpush.bf16.msra.mxu0 %v934
        %1405 = vmatpush.bf16.msra.mxu0 %v926
        %1406 = vmatpush.bf16.msra.mxu0 %v918
        %1407 = vmatpush.bf16.msra.mxu0 %v910
        %1408 = vmatpush.bf16.msra.mxu0 %v902
        %1409 = vmatpush.bf16.msra.mxu0 %v894
        %1410 = vmatmul.bf16.gmra.mxu0 %v579
        %v1411 = vpop.f32.mrf.mxu0
        %v1412 = vadd.f32 %v518, %v1411
        %v1413 = vpop.f32.mrf.mxu0
        %v1414 = vadd.f32 %v518, %v1413
        %1415 = vmatmul.bf16.gmra.mxu0 %v581
        %v1416 = vpop.f32.mrf.mxu0
        %v1417 = vadd.f32 %v518, %v1416
        %v1418 = vpop.f32.mrf.mxu0
        %v1419 = vadd.f32 %v518, %v1418
        %1420 = vmatmul.bf16.gmra.mxu0 %v583
        %v1421 = vpop.f32.mrf.mxu0
        %v1422 = vadd.f32 %v518, %v1421
        %v1423 = vpop.f32.mrf.mxu0
        %v1424 = vadd.f32 %v518, %v1423
        %1425 = vmatmul.bf16.gmra.mxu0 %v585
        %v1426 = vpop.f32.mrf.mxu0
        %v1427 = vadd.f32 %v518, %v1426
        %v1428 = vpop.f32.mrf.mxu0
        %v1429 = vadd.f32 %v518, %v1428
        %1430 = vmatmul.bf16.gmra.mxu0 %v587
        %v1431 = vpop.f32.mrf.mxu0
        %v1432 = vadd.f32 %v518, %v1431
        %v1433 = vpop.f32.mrf.mxu0
        %v1434 = vadd.f32 %v518, %v1433
        %1435 = vmatmul.bf16.gmra.mxu0 %v589
        %v1436 = vpop.f32.mrf.mxu0
        %v1437 = vadd.f32 %v518, %v1436
        %v1438 = vpop.f32.mrf.mxu0
        %v1439 = vadd.f32 %v518, %v1438
        %1440 = vmatmul.bf16.gmra.mxu0 %v591
        %v1441 = vpop.f32.mrf.mxu0
        %v1442 = vadd.f32 %v518, %v1441
        %v1443 = vpop.f32.mrf.mxu0
        %v1444 = vadd.f32 %v518, %v1443
        %1445 = vmatmul.bf16.gmra.mxu0 %v593
        %v1446 = vpop.f32.mrf.mxu0
        %v1447 = vadd.f32 %v518, %v1446
        %v1448 = vpop.f32.mrf.mxu0
        %v1449 = vadd.f32 %v518, %v1448
        %1450 = vdwg.mxu0
        %1451 = vmatpush.bf16.msra.mxu0 0
        %1452 = vmatpush.bf16.msra.mxu0 0
        %1453 = vmatpush.bf16.msra.mxu0 0
        %1454 = vmatpush.bf16.msra.mxu0 0
        %1455 = vmatpush.bf16.msra.mxu0 %v982
        %1456 = vmatpush.bf16.msra.mxu0 %v974
        %1457 = vmatpush.bf16.msra.mxu0 %v966
        %1458 = vmatpush.bf16.msra.mxu0 %v958
        %1459 = vmatmul.bf16.gmra.mxu0 %v1085
        %v1460 = vpop.f32.mrf.mxu0
        %v1461 = vadd.f32 %v1412, %v1460
        %v1462 = vpop.f32.mrf.mxu0
        %v1463 = vadd.f32 %v1414, %v1462
        %1464 = vmatmul.bf16.gmra.mxu0 %v1088
        %v1465 = vpop.f32.mrf.mxu0
        %v1466 = vadd.f32 %v1417, %v1465
        %v1467 = vpop.f32.mrf.mxu0
        %v1468 = vadd.f32 %v1419, %v1467
        %1469 = vmatmul.bf16.gmra.mxu0 %v1091
        %v1470 = vpop.f32.mrf.mxu0
        %v1471 = vadd.f32 %v1422, %v1470
        %v1472 = vpop.f32.mrf.mxu0
        %v1473 = vadd.f32 %v1424, %v1472
        %1474 = vmatmul.bf16.gmra.mxu0 %v1094
        %v1475 = vpop.f32.mrf.mxu0
        %v1476 = vadd.f32 %v1427, %v1475
        %v1477 = vpop.f32.mrf.mxu0
        %v1478 = vadd.f32 %v1429, %v1477
        %1479 = vmatmul.bf16.gmra.mxu0 %v1097
        %v1480 = vpop.f32.mrf.mxu0
        %v1481 = vadd.f32 %v1432, %v1480
        %v1482 = vpop.f32.mrf.mxu0
        %v1483 = vadd.f32 %v1434, %v1482
        %1484 = vmatmul.bf16.gmra.mxu0 %v1100
        %v1485 = vpop.f32.mrf.mxu0
        %v1486 = vadd.f32 %v1437, %v1485
        %v1487 = vpop.f32.mrf.mxu0
        %v1488 = vadd.f32 %v1439, %v1487
        %1489 = vmatmul.bf16.gmra.mxu0 %v1103
        %v1490 = vpop.f32.mrf.mxu0
        %v1491 = vadd.f32 %v1442, %v1490
        %v1492 = vpop.f32.mrf.mxu0
        %v1493 = vadd.f32 %v1444, %v1492
        %1494 = vmatmul.bf16.gmra.mxu0 %v1106
        %v1495 = vpop.f32.mrf.mxu0
        %v1496 = vadd.f32 %v1447, %v1495
        %v1497 = vpop.f32.mrf.mxu0
        %v1498 = vadd.f32 %v1449, %v1497
        %1499 = vdwg.mxu0
        %1500 = vmatpush.bf16.msra.mxu0 %v951
        %1501 = vmatpush.bf16.msra.mxu0 %v943
        %1502 = vmatpush.bf16.msra.mxu0 %v935
        %1503 = vmatpush.bf16.msra.mxu0 %v927
        %1504 = vmatpush.bf16.msra.mxu0 %v919
        %1505 = vmatpush.bf16.msra.mxu0 %v911
        %1506 = vmatpush.bf16.msra.mxu0 %v903
        %1507 = vmatpush.bf16.msra.mxu0 %v895
        %1508 = vmatmul.bf16.gmra.mxu0 %v579
        %v1509 = vpop.f32.mrf.mxu0
        %v1510 = vadd.f32 %v519, %v1509
        %v1511 = vpop.f32.mrf.mxu0
        %v1512 = vadd.f32 %v519, %v1511
        %1513 = vmatmul.bf16.gmra.mxu0 %v581
        %v1514 = vpop.f32.mrf.mxu0
        %v1515 = vadd.f32 %v519, %v1514
        %v1516 = vpop.f32.mrf.mxu0
        %v1517 = vadd.f32 %v519, %v1516
        %1518 = vmatmul.bf16.gmra.mxu0 %v583
        %v1519 = vpop.f32.mrf.mxu0
        %v1520 = vadd.f32 %v519, %v1519
        %v1521 = vpop.f32.mrf.mxu0
        %v1522 = vadd.f32 %v519, %v1521
        %1523 = vmatmul.bf16.gmra.mxu0 %v585
        %v1524 = vpop.f32.mrf.mxu0
        %v1525 = vadd.f32 %v519, %v1524
        %v1526 = vpop.f32.mrf.mxu0
        %v1527 = vadd.f32 %v519, %v1526
        %1528 = vmatmul.bf16.gmra.mxu0 %v587
        %v1529 = vpop.f32.mrf.mxu0
        %v1530 = vadd.f32 %v519, %v1529
        %v1531 = vpop.f32.mrf.mxu0
        %v1532 = vadd.f32 %v519, %v1531
        %1533 = vmatmul.bf16.gmra.mxu0 %v589
        %v1534 = vpop.f32.mrf.mxu0
        %v1535 = vadd.f32 %v519, %v1534
        %v1536 = vpop.f32.mrf.mxu0
        %v1537 = vadd.f32 %v519, %v1536
        %1538 = vmatmul.bf16.gmra.mxu0 %v591
        %v1539 = vpop.f32.mrf.mxu0
        %v1540 = vadd.f32 %v519, %v1539
        %v1541 = vpop.f32.mrf.mxu0
        %v1542 = vadd.f32 %v519, %v1541
        %1543 = vmatmul.bf16.gmra.mxu0 %v593
        %v1544 = vpop.f32.mrf.mxu0
        %v1545 = vadd.f32 %v519, %v1544
        %v1546 = vpop.f32.mrf.mxu0
        %v1547 = vadd.f32 %v519, %v1546
        %1548 = vdwg.mxu0
        %1549 = vmatpush.bf16.msra.mxu0 0
        %1550 = vmatpush.bf16.msra.mxu0 0
        %1551 = vmatpush.bf16.msra.mxu0 0
        %1552 = vmatpush.bf16.msra.mxu0 0
        %1553 = vmatpush.bf16.msra.mxu0 %v983
        %1554 = vmatpush.bf16.msra.mxu0 %v975
        %1555 = vmatpush.bf16.msra.mxu0 %v967
        %1556 = vmatpush.bf16.msra.mxu0 %v959
        %1557 = vmatmul.bf16.gmra.mxu0 %v1085
        %v1558 = vpop.f32.mrf.mxu0
        %v1559 = vadd.f32 %v1510, %v1558
        %v1560 = vpop.f32.mrf.mxu0
        %v1561 = vadd.f32 %v1512, %v1560
        %1562 = vmatmul.bf16.gmra.mxu0 %v1088
        %v1563 = vpop.f32.mrf.mxu0
        %v1564 = vadd.f32 %v1515, %v1563
        %v1565 = vpop.f32.mrf.mxu0
        %v1566 = vadd.f32 %v1517, %v1565
        %1567 = vmatmul.bf16.gmra.mxu0 %v1091
        %v1568 = vpop.f32.mrf.mxu0
        %v1569 = vadd.f32 %v1520, %v1568
        %v1570 = vpop.f32.mrf.mxu0
        %v1571 = vadd.f32 %v1522, %v1570
        %1572 = vmatmul.bf16.gmra.mxu0 %v1094
        %v1573 = vpop.f32.mrf.mxu0
        %v1574 = vadd.f32 %v1525, %v1573
        %v1575 = vpop.f32.mrf.mxu0
        %v1576 = vadd.f32 %v1527, %v1575
        %1577 = vmatmul.bf16.gmra.mxu0 %v1097
        %v1578 = vpop.f32.mrf.mxu0
        %v1579 = vadd.f32 %v1530, %v1578
        %v1580 = vpop.f32.mrf.mxu0
        %v1581 = vadd.f32 %v1532, %v1580
        %1582 = vmatmul.bf16.gmra.mxu0 %v1100
        %v1583 = vpop.f32.mrf.mxu0
        %v1584 = vadd.f32 %v1535, %v1583
        %v1585 = vpop.f32.mrf.mxu0
        %v1586 = vadd.f32 %v1537, %v1585
        %1587 = vmatmul.bf16.gmra.mxu0 %v1103
        %v1588 = vpop.f32.mrf.mxu0
        %v1589 = vadd.f32 %v1540, %v1588
        %v1590 = vpop.f32.mrf.mxu0
        %v1591 = vadd.f32 %v1542, %v1590
        %1592 = vmatmul.bf16.gmra.mxu0 %v1106
        %v1593 = vpop.f32.mrf.mxu0
        %v1594 = vadd.f32 %v1545, %v1593
        %v1595 = vpop.f32.mrf.mxu0
        %v1596 = vadd.f32 %v1547, %v1595
        %1597 = vdwg.mxu0
        %1598 = vmatpush.bf16.msra.mxu0 %v952
        %1599 = vmatpush.bf16.msra.mxu0 %v944
        %1600 = vmatpush.bf16.msra.mxu0 %v936
        %1601 = vmatpush.bf16.msra.mxu0 %v928
        %1602 = vmatpush.bf16.msra.mxu0 %v920
        %1603 = vmatpush.bf16.msra.mxu0 %v912
        %1604 = vmatpush.bf16.msra.mxu0 %v904
        %1605 = vmatpush.bf16.msra.mxu0 %v896
        %1606 = vmatmul.bf16.gmra.mxu0 %v579
        %v1607 = vpop.f32.mrf.mxu0
        %v1608 = vadd.f32 %v520, %v1607
        %v1609 = vpop.f32.mrf.mxu0
        %v1610 = vadd.f32 %v520, %v1609
        %1611 = vmatmul.bf16.gmra.mxu0 %v581
        %v1612 = vpop.f32.mrf.mxu0
        %v1613 = vadd.f32 %v520, %v1612
        %v1614 = vpop.f32.mrf.mxu0
        %v1615 = vadd.f32 %v520, %v1614
        %1616 = vmatmul.bf16.gmra.mxu0 %v583
        %v1617 = vpop.f32.mrf.mxu0
        %v1618 = vadd.f32 %v520, %v1617
        %v1619 = vpop.f32.mrf.mxu0
        %v1620 = vadd.f32 %v520, %v1619
        %1621 = vmatmul.bf16.gmra.mxu0 %v585
        %v1622 = vpop.f32.mrf.mxu0
        %v1623 = vadd.f32 %v520, %v1622
        %v1624 = vpop.f32.mrf.mxu0
        %v1625 = vadd.f32 %v520, %v1624
        %1626 = vmatmul.bf16.gmra.mxu0 %v587
        %v1627 = vpop.f32.mrf.mxu0
        %v1628 = vadd.f32 %v520, %v1627
        %v1629 = vpop.f32.mrf.mxu0
        %v1630 = vadd.f32 %v520, %v1629
        %1631 = vmatmul.bf16.gmra.mxu0 %v589
        %v1632 = vpop.f32.mrf.mxu0
        %v1633 = vadd.f32 %v520, %v1632
        %v1634 = vpop.f32.mrf.mxu0
        %v1635 = vadd.f32 %v520, %v1634
        %1636 = vmatmul.bf16.gmra.mxu0 %v591
        %v1637 = vpop.f32.mrf.mxu0
        %v1638 = vadd.f32 %v520, %v1637
        %v1639 = vpop.f32.mrf.mxu0
        %v1640 = vadd.f32 %v520, %v1639
        %1641 = vmatmul.bf16.gmra.mxu0 %v593
        %v1642 = vpop.f32.mrf.mxu0
        %v1643 = vadd.f32 %v520, %v1642
        %v1644 = vpop.f32.mrf.mxu0
        %v1645 = vadd.f32 %v520, %v1644
        %1646 = vdwg.mxu0
        %1647 = vmatpush.bf16.msra.mxu0 0
        %1648 = vmatpush.bf16.msra.mxu0 0
        %1649 = vmatpush.bf16.msra.mxu0 0
        %1650 = vmatpush.bf16.msra.mxu0 0
        %1651 = vmatpush.bf16.msra.mxu0 %v984
        %1652 = vmatpush.bf16.msra.mxu0 %v976
        %1653 = vmatpush.bf16.msra.mxu0 %v968
        %1654 = vmatpush.bf16.msra.mxu0 %v960
        %1655 = vmatmul.bf16.gmra.mxu0 %v1085
        %v1656 = vpop.f32.mrf.mxu0
        %v1657 = vadd.f32 %v1608, %v1656
        %v1658 = vpop.f32.mrf.mxu0
        %v1659 = vadd.f32 %v1610, %v1658
        %1660 = vmatmul.bf16.gmra.mxu0 %v1088
        %v1661 = vpop.f32.mrf.mxu0
        %v1662 = vadd.f32 %v1613, %v1661
        %v1663 = vpop.f32.mrf.mxu0
        %v1664 = vadd.f32 %v1615, %v1663
        %1665 = vmatmul.bf16.gmra.mxu0 %v1091
        %v1666 = vpop.f32.mrf.mxu0
        %v1667 = vadd.f32 %v1618, %v1666
        %v1668 = vpop.f32.mrf.mxu0
        %v1669 = vadd.f32 %v1620, %v1668
        %1670 = vmatmul.bf16.gmra.mxu0 %v1094
        %v1671 = vpop.f32.mrf.mxu0
        %v1672 = vadd.f32 %v1623, %v1671
        %v1673 = vpop.f32.mrf.mxu0
        %v1674 = vadd.f32 %v1625, %v1673
        %1675 = vmatmul.bf16.gmra.mxu0 %v1097
        %v1676 = vpop.f32.mrf.mxu0
        %v1677 = vadd.f32 %v1628, %v1676
        %v1678 = vpop.f32.mrf.mxu0
        %v1679 = vadd.f32 %v1630, %v1678
        %1680 = vmatmul.bf16.gmra.mxu0 %v1100
        %v1681 = vpop.f32.mrf.mxu0
        %v1682 = vadd.f32 %v1633, %v1681
        %v1683 = vpop.f32.mrf.mxu0
        %v1684 = vadd.f32 %v1635, %v1683
        %1685 = vmatmul.bf16.gmra.mxu0 %v1103
        %v1686 = vpop.f32.mrf.mxu0
        %v1687 = vadd.f32 %v1638, %v1686
        %v1688 = vpop.f32.mrf.mxu0
        %v1689 = vadd.f32 %v1640, %v1688
        %1690 = vmatmul.bf16.gmra.mxu0 %v1106
        %v1691 = vpop.f32.mrf.mxu0
        %v1692 = vadd.f32 %v1643, %v1691
        %v1693 = vpop.f32.mrf.mxu0
        %v1694 = vadd.f32 %v1645, %v1693
        %1695 = vdwg.mxu0
        %1696 = vmatpush.bf16.msra.mxu0 %v953
        %1697 = vmatpush.bf16.msra.mxu0 %v945
        %1698 = vmatpush.bf16.msra.mxu0 %v937
        %1699 = vmatpush.bf16.msra.mxu0 %v929
        %1700 = vmatpush.bf16.msra.mxu0 %v921
        %1701 = vmatpush.bf16.msra.mxu0 %v913
        %1702 = vmatpush.bf16.msra.mxu0 %v905
        %1703 = vmatpush.bf16.msra.mxu0 %v897
        %1704 = vmatmul.bf16.gmra.mxu0 %v579
        %v1705 = vpop.f32.mrf.mxu0
        %v1706 = vadd.f32 %v521, %v1705
        %v1707 = vpop.f32.mrf.mxu0
        %v1708 = vadd.f32 %v521, %v1707
        %1709 = vmatmul.bf16.gmra.mxu0 %v581
        %v1710 = vpop.f32.mrf.mxu0
        %v1711 = vadd.f32 %v521, %v1710
        %v1712 = vpop.f32.mrf.mxu0
        %v1713 = vadd.f32 %v521, %v1712
        %1714 = vmatmul.bf16.gmra.mxu0 %v583
        %v1715 = vpop.f32.mrf.mxu0
        %v1716 = vadd.f32 %v521, %v1715
        %v1717 = vpop.f32.mrf.mxu0
        %v1718 = vadd.f32 %v521, %v1717
        %1719 = vmatmul.bf16.gmra.mxu0 %v585
        %v1720 = vpop.f32.mrf.mxu0
        %v1721 = vadd.f32 %v521, %v1720
        %v1722 = vpop.f32.mrf.mxu0
        %v1723 = vadd.f32 %v521, %v1722
        %1724 = vmatmul.bf16.gmra.mxu0 %v587
        %v1725 = vpop.f32.mrf.mxu0
        %v1726 = vadd.f32 %v521, %v1725
        %v1727 = vpop.f32.mrf.mxu0
        %v1728 = vadd.f32 %v521, %v1727
        %1729 = vmatmul.bf16.gmra.mxu0 %v589
        %v1730 = vpop.f32.mrf.mxu0
        %v1731 = vadd.f32 %v521, %v1730
        %v1732 = vpop.f32.mrf.mxu0
        %v1733 = vadd.f32 %v521, %v1732
        %1734 = vmatmul.bf16.gmra.mxu0 %v591
        %v1735 = vpop.f32.mrf.mxu0
        %v1736 = vadd.f32 %v521, %v1735
        %v1737 = vpop.f32.mrf.mxu0
        %v1738 = vadd.f32 %v521, %v1737
        %1739 = vmatmul.bf16.gmra.mxu0 %v593
        %v1740 = vpop.f32.mrf.mxu0
        %v1741 = vadd.f32 %v521, %v1740
        %v1742 = vpop.f32.mrf.mxu0
        %v1743 = vadd.f32 %v521, %v1742
        %1744 = vdwg.mxu0
        %1745 = vmatpush.bf16.msra.mxu0 0
        %1746 = vmatpush.bf16.msra.mxu0 0
        %1747 = vmatpush.bf16.msra.mxu0 0
        %1748 = vmatpush.bf16.msra.mxu0 0
        %1749 = vmatpush.bf16.msra.mxu0 %v985
        %1750 = vmatpush.bf16.msra.mxu0 %v977
        %1751 = vmatpush.bf16.msra.mxu0 %v969
        %1752 = vmatpush.bf16.msra.mxu0 %v961
        %1753 = vmatmul.bf16.gmra.mxu0 %v1085
        %v1754 = vpop.f32.mrf.mxu0
        %v1755 = vadd.f32 %v1706, %v1754
        %v1756 = vpop.f32.mrf.mxu0
        %v1757 = vadd.f32 %v1708, %v1756
        %1758 = vmatmul.bf16.gmra.mxu0 %v1088
        %v1759 = vpop.f32.mrf.mxu0
        %v1760 = vadd.f32 %v1711, %v1759
        %v1761 = vpop.f32.mrf.mxu0
        %v1762 = vadd.f32 %v1713, %v1761
        %1763 = vmatmul.bf16.gmra.mxu0 %v1091
        %v1764 = vpop.f32.mrf.mxu0
        %v1765 = vadd.f32 %v1716, %v1764
        %v1766 = vpop.f32.mrf.mxu0
        %v1767 = vadd.f32 %v1718, %v1766
        %1768 = vmatmul.bf16.gmra.mxu0 %v1094
        %v1769 = vpop.f32.mrf.mxu0
        %v1770 = vadd.f32 %v1721, %v1769
        %v1771 = vpop.f32.mrf.mxu0
        %v1772 = vadd.f32 %v1723, %v1771
        %1773 = vmatmul.bf16.gmra.mxu0 %v1097
        %v1774 = vpop.f32.mrf.mxu0
        %v1775 = vadd.f32 %v1726, %v1774
        %v1776 = vpop.f32.mrf.mxu0
        %v1777 = vadd.f32 %v1728, %v1776
        %1778 = vmatmul.bf16.gmra.mxu0 %v1100
        %v1779 = vpop.f32.mrf.mxu0
        %v1780 = vadd.f32 %v1731, %v1779
        %v1781 = vpop.f32.mrf.mxu0
        %v1782 = vadd.f32 %v1733, %v1781
        %1783 = vmatmul.bf16.gmra.mxu0 %v1103
        %v1784 = vpop.f32.mrf.mxu0
        %v1785 = vadd.f32 %v1736, %v1784
        %v1786 = vpop.f32.mrf.mxu0
        %v1787 = vadd.f32 %v1738, %v1786
        %1788 = vmatmul.bf16.gmra.mxu0 %v1106
        %v1789 = vpop.f32.mrf.mxu0
        %v1790 = vadd.f32 %v1741, %v1789
        %v1791 = vpop.f32.mrf.mxu0
        %v1792 = vadd.f32 %v1743, %v1791
        %1793 = vdwg.mxu0
        %1794 = vmatpush.bf16.msra.mxu0 %v954
        %1795 = vmatpush.bf16.msra.mxu0 %v946
        %1796 = vmatpush.bf16.msra.mxu0 %v938
        %1797 = vmatpush.bf16.msra.mxu0 %v930
        %1798 = vmatpush.bf16.msra.mxu0 %v922
        %1799 = vmatpush.bf16.msra.mxu0 %v914
        %1800 = vmatpush.bf16.msra.mxu0 %v906
        %1801 = vmatpush.bf16.msra.mxu0 %v898
        %1802 = vmatmul.bf16.gmra.mxu0 %v579
        %v1803 = vpop.f32.mrf.mxu0
        %v1804 = vadd.f32 %v522, %v1803
        %v1805 = vpop.f32.mrf.mxu0
        %v1806 = vadd.f32 %v522, %v1805
        %1807 = vmatmul.bf16.gmra.mxu0 %v581
        %v1808 = vpop.f32.mrf.mxu0
        %v1809 = vadd.f32 %v522, %v1808
        %v1810 = vpop.f32.mrf.mxu0
        %v1811 = vadd.f32 %v522, %v1810
        %1812 = vmatmul.bf16.gmra.mxu0 %v583
        %v1813 = vpop.f32.mrf.mxu0
        %v1814 = vadd.f32 %v522, %v1813
        %v1815 = vpop.f32.mrf.mxu0
        %v1816 = vadd.f32 %v522, %v1815
        %1817 = vmatmul.bf16.gmra.mxu0 %v585
        %v1818 = vpop.f32.mrf.mxu0
        %v1819 = vadd.f32 %v522, %v1818
        %v1820 = vpop.f32.mrf.mxu0
        %v1821 = vadd.f32 %v522, %v1820
        %1822 = vmatmul.bf16.gmra.mxu0 %v587
        %v1823 = vpop.f32.mrf.mxu0
        %v1824 = vadd.f32 %v522, %v1823
        %v1825 = vpop.f32.mrf.mxu0
        %v1826 = vadd.f32 %v522, %v1825
        %1827 = vmatmul.bf16.gmra.mxu0 %v589
        %v1828 = vpop.f32.mrf.mxu0
        %v1829 = vadd.f32 %v522, %v1828
        %v1830 = vpop.f32.mrf.mxu0
        %v1831 = vadd.f32 %v522, %v1830
        %1832 = vmatmul.bf16.gmra.mxu0 %v591
        %v1833 = vpop.f32.mrf.mxu0
        %v1834 = vadd.f32 %v522, %v1833
        %v1835 = vpop.f32.mrf.mxu0
        %v1836 = vadd.f32 %v522, %v1835
        %1837 = vmatmul.bf16.gmra.mxu0 %v593
        %v1838 = vpop.f32.mrf.mxu0
        %v1839 = vadd.f32 %v522, %v1838
        %v1840 = vpop.f32.mrf.mxu0
        %v1841 = vadd.f32 %v522, %v1840
        %1842 = vdwg.mxu0
        %1843 = vmatpush.bf16.msra.mxu0 0
        %1844 = vmatpush.bf16.msra.mxu0 0
        %1845 = vmatpush.bf16.msra.mxu0 0
        %1846 = vmatpush.bf16.msra.mxu0 0
        %1847 = vmatpush.bf16.msra.mxu0 %v986
        %1848 = vmatpush.bf16.msra.mxu0 %v978
        %1849 = vmatpush.bf16.msra.mxu0 %v970
        %1850 = vmatpush.bf16.msra.mxu0 %v962
        %1851 = vmatmul.bf16.gmra.mxu0 %v1085
        %v1852 = vpop.f32.mrf.mxu0
        %v1853 = vadd.f32 %v1804, %v1852
        %v1854 = vpop.f32.mrf.mxu0
        %v1855 = vadd.f32 %v1806, %v1854
        %1856 = vmatmul.bf16.gmra.mxu0 %v1088
        %v1857 = vpop.f32.mrf.mxu0
        %v1858 = vadd.f32 %v1809, %v1857
        %v1859 = vpop.f32.mrf.mxu0
        %v1860 = vadd.f32 %v1811, %v1859
        %1861 = vmatmul.bf16.gmra.mxu0 %v1091
        %v1862 = vpop.f32.mrf.mxu0
        %v1863 = vadd.f32 %v1814, %v1862
        %v1864 = vpop.f32.mrf.mxu0
        %v1865 = vadd.f32 %v1816, %v1864
        %1866 = vmatmul.bf16.gmra.mxu0 %v1094
        %v1867 = vpop.f32.mrf.mxu0
        %v1868 = vadd.f32 %v1819, %v1867
        %v1869 = vpop.f32.mrf.mxu0
        %v1870 = vadd.f32 %v1821, %v1869
        %1871 = vmatmul.bf16.gmra.mxu0 %v1097
        %v1872 = vpop.f32.mrf.mxu0
        %v1873 = vadd.f32 %v1824, %v1872
        %v1874 = vpop.f32.mrf.mxu0
        %v1875 = vadd.f32 %v1826, %v1874
        %1876 = vmatmul.bf16.gmra.mxu0 %v1100
        %v1877 = vpop.f32.mrf.mxu0
        %v1878 = vadd.f32 %v1829, %v1877
        %v1879 = vpop.f32.mrf.mxu0
        %v1880 = vadd.f32 %v1831, %v1879
        %1881 = vmatmul.bf16.gmra.mxu0 %v1103
        %v1882 = vpop.f32.mrf.mxu0
        %v1883 = vadd.f32 %v1834, %v1882
        %v1884 = vpop.f32.mrf.mxu0
        %v1885 = vadd.f32 %v1836, %v1884
        %1886 = vmatmul.bf16.gmra.mxu0 %v1106
        %v1887 = vpop.f32.mrf.mxu0
        %v1888 = vadd.f32 %v1839, %v1887
        %v1889 = vpop.f32.mrf.mxu0
        %v1890 = vadd.f32 %v1841, %v1889
        %1891 = vdwg.mxu0
        %v1892 = vpack.c.bf16 %v1265, %v1167
        %v1893 = vpack.c.bf16 %v1461, %v1363
        %v1894 = vpack.c.bf16 %v1657, %v1559
        %v1895 = vpack.c.bf16 %v1853, %v1755
        %v1896 = vpack.c.bf16 %v1267, %v1169
        %v1897 = vpack.c.bf16 %v1463, %v1365
        %v1898 = vpack.c.bf16 %v1659, %v1561
        %v1899 = vpack.c.bf16 %v1855, %v1757
        %v1900 = vpack.c.bf16 %v1270, %v1172
        %v1901 = vpack.c.bf16 %v1466, %v1368
        %v1902 = vpack.c.bf16 %v1662, %v1564
        %v1903 = vpack.c.bf16 %v1858, %v1760
        %v1904 = vpack.c.bf16 %v1272, %v1174
        %v1905 = vpack.c.bf16 %v1468, %v1370
        %v1906 = vpack.c.bf16 %v1664, %v1566
        %v1907 = vpack.c.bf16 %v1860, %v1762
        %v1908 = vpack.c.bf16 %v1275, %v1177
        %v1909 = vpack.c.bf16 %v1471, %v1373
        %v1910 = vpack.c.bf16 %v1667, %v1569
        %v1911 = vpack.c.bf16 %v1863, %v1765
        %v1912 = vpack.c.bf16 %v1277, %v1179
        %v1913 = vpack.c.bf16 %v1473, %v1375
        %v1914 = vpack.c.bf16 %v1669, %v1571
        %v1915 = vpack.c.bf16 %v1865, %v1767
        %v1916 = vpack.c.bf16 %v1280, %v1182
        %v1917 = vpack.c.bf16 %v1476, %v1378
        %v1918 = vpack.c.bf16 %v1672, %v1574
        %v1919 = vpack.c.bf16 %v1868, %v1770
        %v1920 = vpack.c.bf16 %v1282, %v1184
        %v1921 = vpack.c.bf16 %v1478, %v1380
        %v1922 = vpack.c.bf16 %v1674, %v1576
        %v1923 = vpack.c.bf16 %v1870, %v1772
        %v1924 = vpack.c.bf16 %v1285, %v1187
        %v1925 = vpack.c.bf16 %v1481, %v1383
        %v1926 = vpack.c.bf16 %v1677, %v1579
        %v1927 = vpack.c.bf16 %v1873, %v1775
        %v1928 = vpack.c.bf16 %v1287, %v1189
        %v1929 = vpack.c.bf16 %v1483, %v1385
        %v1930 = vpack.c.bf16 %v1679, %v1581
        %v1931 = vpack.c.bf16 %v1875, %v1777
        %v1932 = vpack.c.bf16 %v1290, %v1192
        %v1933 = vpack.c.bf16 %v1486, %v1388
        %v1934 = vpack.c.bf16 %v1682, %v1584
        %v1935 = vpack.c.bf16 %v1878, %v1780
        %v1936 = vpack.c.bf16 %v1292, %v1194
        %v1937 = vpack.c.bf16 %v1488, %v1390
        %v1938 = vpack.c.bf16 %v1684, %v1586
        %v1939 = vpack.c.bf16 %v1880, %v1782
        %v1940 = vpack.c.bf16 %v1295, %v1197
        %v1941 = vpack.c.bf16 %v1491, %v1393
        %v1942 = vpack.c.bf16 %v1687, %v1589
        %v1943 = vpack.c.bf16 %v1883, %v1785
        %v1944 = vpack.c.bf16 %v1297, %v1199
        %v1945 = vpack.c.bf16 %v1493, %v1395
        %v1946 = vpack.c.bf16 %v1689, %v1591
        %v1947 = vpack.c.bf16 %v1885, %v1787
        %v1948 = vpack.c.bf16 %v1300, %v1202
        %v1949 = vpack.c.bf16 %v1496, %v1398
        %v1950 = vpack.c.bf16 %v1692, %v1594
        %v1951 = vpack.c.bf16 %v1888, %v1790
        %v1952 = vpack.c.bf16 %v1302, %v1204
        %v1953 = vpack.c.bf16 %v1498, %v1400
        %v1954 = vpack.c.bf16 %v1694, %v1596
        %v1955 = vpack.c.bf16 %v1890, %v1792
        %1956 = vst [vmem:[%s392] sm:$0xff] %v1892
        %1957 = vst [vmem:[%s392 + $0x8] sm:$0xff] %v1893
        %1958 = vst [vmem:[%s392 + $0x10] sm:$0xff] %v1894
        %1959 = vst [vmem:[%s392 + $0x18] sm:$0xff] %v1895
        %1960 = vst [vmem:[%s392 + $0x20] sm:$0xff] %v1896
        %1961 = vst [vmem:[%s392 + $0x28] sm:$0xff] %v1897
        %1962 = vst [vmem:[%s392 + $0x30] sm:$0xff] %v1898
        %1963 = vst [vmem:[%s392 + $0x38] sm:$0xff] %v1899
        %1964 = vst [vmem:[%s392 + $0x40] sm:$0xff] %v1900
        %1965 = vst [vmem:[%s392 + $0x48] sm:$0xff] %v1901
        %1966 = vst [vmem:[%s392 + $0x50] sm:$0xff] %v1902
        %1967 = vst [vmem:[%s392 + $0x58] sm:$0xff] %v1903
        %1968 = vst [vmem:[%s392 + $0x60] sm:$0xff] %v1904
        %1969 = vst [vmem:[%s392 + $0x68] sm:$0xff] %v1905
        %1970 = vst [vmem:[%s392 + $0x70] sm:$0xff] %v1906
        %1971 = vst [vmem:[%s392 + $0x78] sm:$0xff] %v1907
        %1972 = vst [vmem:[%s392 + $0x80] sm:$0xff] %v1908
        %1973 = vst [vmem:[%s392 + $0x88] sm:$0xff] %v1909
        %1974 = vst [vmem:[%s392 + $0x90] sm:$0xff] %v1910
        %1975 = vst [vmem:[%s392 + $0x98] sm:$0xff] %v1911
        %1976 = vst [vmem:[%s392 + $0xa0] sm:$0xff] %v1912
        %1977 = vst [vmem:[%s392 + $0xa8] sm:$0xff] %v1913
        %1978 = vst [vmem:[%s392 + $0xb0] sm:$0xff] %v1914
        %1979 = vst [vmem:[%s392 + $0xb8] sm:$0xff] %v1915
        %1980 = vst [vmem:[%s392 + $0xc0] sm:$0xff] %v1916
        %1981 = vst [vmem:[%s392 + $0xc8] sm:$0xff] %v1917
        %1982 = vst [vmem:[%s392 + $0xd0] sm:$0xff] %v1918
        %1983 = vst [vmem:[%s392 + $0xd8] sm:$0xff] %v1919
        %1984 = vst [vmem:[%s392 + $0xe0] sm:$0xff] %v1920
        %1985 = vst [vmem:[%s392 + $0xe8] sm:$0xff] %v1921
        %1986 = vst [vmem:[%s392 + $0xf0] sm:$0xff] %v1922
        %1987 = vst [vmem:[%s392 + $0xf8] sm:$0xff] %v1923
        %1988 = vst [vmem:[%s392 + $0x100] sm:$0xff] %v1924
        %1989 = vst [vmem:[%s392 + $0x108] sm:$0xff] %v1925
        %1990 = vst [vmem:[%s392 + $0x110] sm:$0xff] %v1926
        %1991 = vst [vmem:[%s392 + $0x118] sm:$0xff] %v1927
        %1992 = vst [vmem:[%s392 + $0x120] sm:$0xff] %v1928
        %1993 = vst [vmem:[%s392 + $0x128] sm:$0xff] %v1929
        %1994 = vst [vmem:[%s392 + $0x130] sm:$0xff] %v1930
        %1995 = vst [vmem:[%s392 + $0x138] sm:$0xff] %v1931
        %1996 = vst [vmem:[%s392 + $0x140] sm:$0xff] %v1932
        %1997 = vst [vmem:[%s392 + $0x148] sm:$0xff] %v1933
        %1998 = vst [vmem:[%s392 + $0x150] sm:$0xff] %v1934
        %1999 = vst [vmem:[%s392 + $0x158] sm:$0xff] %v1935
        %2000 = vst [vmem:[%s392 + $0x160] sm:$0xff] %v1936
        %2001 = vst [vmem:[%s392 + $0x168] sm:$0xff] %v1937
        %2002 = vst [vmem:[%s392 + $0x170] sm:$0xff] %v1938
        %2003 = vst [vmem:[%s392 + $0x178] sm:$0xff] %v1939
        %2004 = vst [vmem:[%s392 + $0x180] sm:$0xff] %v1940
        %2005 = vst [vmem:[%s392 + $0x188] sm:$0xff] %v1941
        %2006 = vst [vmem:[%s392 + $0x190] sm:$0xff] %v1942
        %2007 = vst [vmem:[%s392 + $0x198] sm:$0xff] %v1943
        %2008 = vst [vmem:[%s392 + $0x1a0] sm:$0xff] %v1944
        %2009 = vst [vmem:[%s392 + $0x1a8] sm:$0xff] %v1945
        %2010 = vst [vmem:[%s392 + $0x1b0] sm:$0xff] %v1946
        %2011 = vst [vmem:[%s392 + $0x1b8] sm:$0xff] %v1947
        %2012 = vst [vmem:[%s392 + $0x1c0] sm:$0xff] %v1948
        %2013 = vst [vmem:[%s392 + $0x1c8] sm:$0xff] %v1949
        %2014 = vst [vmem:[%s392 + $0x1d0] sm:$0xff] %v1950
        %2015 = vst [vmem:[%s392 + $0x1d8] sm:$0xff] %v1951
        %2016 = vst [vmem:[%s392 + $0x1e0] sm:$0xff] %v1952
        %2017 = vst [vmem:[%s392 + $0x1e8] sm:$0xff] %v1953
        %2018 = vst [vmem:[%s392 + $0x1f0] sm:$0xff] %v1954
        %2019 = vst [vmem:[%s392 + $0x1f8] sm:$0xff] %v1955
        %s2020 = sand.u32 %s98, 1
        %s2021 = scalar_lea.sflag [#allocation4], %s2020
        %s2022 = sand.u32 %s98, 1
        %s2023 = smul.addr %s2022, 512
        %s2024 = scalar_lea.vmem [#allocation3], %s2023
        // Predicated region
        $region56: #{bengio_forward.1} parent=50 // pred_check
          %p2025 = pneg %p108
        $region57: #{bengio_forward.1} parent=50 // pred_check_branch
          %2027 = sbr.rel (%p2025) target = $region59
        $region58: #{bengio_forward.1} parent=50 // pred_region
          %s2028 = smul.u32 8, %s17
          %2030 = vsyncadd %s2021, 0
          %s2031 = smul.addr %s2028, 4
          %s2032 = scalar_lea.hbm %s3, %s2031
          %s2033 = sshll.u32 %s2024, 4
          %s2034 = int_to_ptr.vmem [resolvable:$true] %s2033
          %s2035 = sshll.u32 %s2032, 4
          %s2036 = int_to_ptr.hbm [resolvable:$true] %s2035
          %2041 = dma.vmem_to_hbm [thread:$0]  %s2034, 8192, %s2036, %s2021, 512, 1024, 32
        $region59: #{bengio_forward.1} parent=50 // pred_fallthru
          _
      $region51: #{bengio_forward.1} parent=5 // pred_fallthru
        _
      %p2042 = scmp.le.s32.totalorder 2, %s12
      // Predicated region
      $region60: #{bengio_forward.1} parent=5 // pred_check
        %p2043 = pneg %p2042
      $region61: #{bengio_forward.1} parent=5 // pred_check_branch
        %2045 = sbr.rel (%p2043) target = $region63
      $region62: #{bengio_forward.1} parent=5 // pred_region
        %s2046 = ssub.s32 %s12, 2
        // Predicated region
        $region64: #{bengio_forward.1} parent=62 // pred_check
          %p2047 = pneg %p114
        $region65: #{bengio_forward.1} parent=62 // pred_check_branch
          %2049 = sbr.rel (%p2047) target = $region67
        $region66: #{bengio_forward.1} parent=62 // pred_region
          %s2050 = sand.u32 %s99, 1
          %s2051 = scalar_lea.sflag [#allocation4], %s2050
          %s2052 = sand.u32 %s99, 1
          %s2053 = smul.addr %s2052, 512
          %s2054 = scalar_lea.vmem [#allocation3], %s2053
          %2056 = dma.done %s2051, 8192
        $region67: #{bengio_forward.1} parent=62 // pred_fallthru
          _
      $region63: #{bengio_forward.1} parent=5 // pred_fallthru
        _
    $region6: #{bengio_forward.1} parent=1 // loop_footer
      %s16 = sadd.s32 1, %s12
    $region7: #{bengio_forward.1} parent=1 // loop_footer_branch
      %11 = sbr.rel target = $region3
    $region8: #{bengio_forward.1} parent=1 // loop_exit
      _
    %2057 = vsyncpa [#allocation4], 1
    %s2058 = scalar_lea.sflag [#allocation4], 1
    %2059 = vsyncpa %s2058, 1

</llo_original>
